<compile_context>
chip_gen: v6e
topology: v6e:2x2x1
jax: 0.10.0
libtpu: 0.0.40
codegen_flags: <defaults>
</compile_context>

<pallas_src>
import functools

import jax
import jax.numpy as jnp
from jax.experimental import pallas as pl
from jax.experimental.pallas import tpu as pltpu


def _vmem():
    # Whole-array block resident in VMEM (shapes on this path are tiny).
    return pl.BlockSpec(memory_space=pltpu.MemorySpace.VMEM)


def _conv_out(size, k, s):
    return (size - k) // s + 1


# ----------------------------------------------------------------------------
# Pallas kernel 1: row-tiled matmul + bias + ReLU (used by the conv layers)
# ----------------------------------------------------------------------------
def _matmul_bias_relu_kernel(x_ref, w_ref, b_ref, o_ref):
    acc = jnp.dot(x_ref[...], w_ref[...], preferred_element_type=jnp.float32)
    acc = jnp.maximum(acc + b_ref[...], 0.0)
    o_ref[...] = acc.astype(o_ref.dtype)


def pallas_matmul_bias_relu(x, w, b, *, out_dtype=jnp.bfloat16, tm_max=512):
    """y = relu(x @ w + b). x:(M,K) bf16, w:(K,N) bf16, b:(1,N) f32.

    Tiled over M so it scales with batch; the M axis is "parallel" so v7x's
    two TensorCores split it (no effect on v5e/v6e). K and N are kept whole
    (K<=512, N<=64 here), so VMEM use stays far under the v5e 16 MiB scoped
    default even double-buffered.
    """
    M, K = x.shape
    K2, N = w.shape
    assert K == K2
    tm = M if M <= tm_max else tm_max
    grid = (pl.cdiv(M, tm),)
    return pl.pallas_call(
        _matmul_bias_relu_kernel,
        out_shape=jax.ShapeDtypeStruct((M, N), out_dtype),
        grid_spec=pltpu.PrefetchScalarGridSpec(
            num_scalar_prefetch=0,
            grid=grid,
            in_specs=[
                pl.BlockSpec((tm, K), lambda i: (i, 0)),
                pl.BlockSpec((K, N), lambda i: (0, 0)),
                pl.BlockSpec((1, N), lambda i: (0, 0)),
            ],
            out_specs=pl.BlockSpec((tm, N), lambda i: (i, 0)),
        ),
        compiler_params=pltpu.CompilerParams(
            dimension_semantics=("parallel",),
            vmem_limit_bytes=32 * 1024 * 1024,
        ),
    )(x, w, b)


# ----------------------------------------------------------------------------
# Pallas kernel 2: fused fc(+ReLU) -> concat-free GRU step (RNNStateEncoder)
# ----------------------------------------------------------------------------
def _fc_gru_kernel(feat_ref, goal_ref, h_ref, m_ref,
                   fcw_ref, fcb_ref,
                   wih_pe_ref, wih_goal_ref, whh_ref,
                   bih_ref, bhh_ref,
                   h_out_ref, *, hidden):
    # Visual fc head: perception_embed = relu(feat @ fc_w + fc_b)  (stays in VMEM).
    pe = jnp.dot(feat_ref[...], fcw_ref[...], preferred_element_type=jnp.float32)
    pe = jnp.maximum(pe + fcb_ref[...], 0.0)

    # RNNStateEncoder: mask hidden state, one nn.GRU step (gate order r, z, n).
    h = h_ref[...] * m_ref[...]
    # concat([pe, goal]) @ W_ih.T  ==  pe @ W_ih_pe + goal @ W_ih_goal
    # (two tile-aligned dots instead of an unaligned K=hidden+2 contraction).
    gi = (jnp.dot(pe.astype(jnp.bfloat16), wih_pe_ref[...],
                  preferred_element_type=jnp.float32)
          + jnp.dot(goal_ref[...], wih_goal_ref[...],
                    preferred_element_type=jnp.float32)
          + bih_ref[...])
    gh = (jnp.dot(h.astype(jnp.bfloat16), whh_ref[...],
                  preferred_element_type=jnp.float32)
          + bhh_ref[...])
    H = hidden
    r = jax.nn.sigmoid(gi[:, 0 * H:1 * H] + gh[:, 0 * H:1 * H])
    z = jax.nn.sigmoid(gi[:, 1 * H:2 * H] + gh[:, 1 * H:2 * H])
    n = jnp.tanh(gi[:, 2 * H:3 * H] + r * gh[:, 2 * H:3 * H])
    h_new = (1.0 - z) * n + z * h
    h_out_ref[...] = h_new.astype(h_out_ref.dtype)


def pallas_fc_gru(feat, goal, h0, masks, prep):
    """Single pallas_call for fc + concat + GRU; h0 buffer reused for the output."""
    B, H = h0.shape
    return pl.pallas_call(
        functools.partial(_fc_gru_kernel, hidden=H),
        out_shape=jax.ShapeDtypeStruct((B, H), jnp.float32),
        in_specs=[_vmem()] * 11,
        out_specs=_vmem(),
        input_output_aliases={2: 0},   # alias h0 -> new hidden state
    )(feat, goal, h0, masks,
      prep["fc_w"], prep["fc_b"],
      prep["gru_w_ih_pe"], prep["gru_w_ih_goal"], prep["gru_w_hh"],
      prep["gru_b_ih"], prep["gru_b_hh"])


# ----------------------------------------------------------------------------
# NHWC im2col (transpose-free) + conv-as-matmul glue
# ----------------------------------------------------------------------------
def _im2col_nhwc(x, k, stride):
    """(k x k) patches from NHWC x; patch order along K is (kh, kw, cin)."""
    N, Hh, Ww, C = x.shape
    OH = _conv_out(Hh, k, stride)
    OW = _conv_out(Ww, k, stride)
    cols = []
    for i in range(k):
        for j in range(k):
            cols.append(x[:, i:i + stride * OH:stride, j:j + stride * OW:stride, :])
    p = jnp.concatenate(cols, axis=-1)                 # (N, OH, OW, k*k*C)
    # TODO(synk): im2col still materializes the k*k-duplicated patch buffer in
    # XLA; moving it in-kernel (strided pl.ds loads from a VMEM image tile)
    # would cut HBM traffic ~k*k-fold at large batch sizes.
    return p.reshape(N * OH * OW, k * k * C), OH, OW


# ----------------------------------------------------------------------------
# Parameters: PyTorch-layout init + one-time layout preparation
# ----------------------------------------------------------------------------
def init_params(key, hidden_size, n_input_goal, img_hw=(48, 48), in_ch=3):
    keys = jax.random.split(key, 12)

    def nrm(k, shape, scale=0.05):
        return scale * jax.random.normal(k, shape, jnp.float32)

    h1, w1 = _conv_out(img_hw[0], 8, 4), _conv_out(img_hw[1], 8, 4)
    h2, w2 = _conv_out(h1, 4, 2), _conv_out(w1, 4, 2)
    h3, w3 = _conv_out(h2, 3, 1), _conv_out(w2, 3, 1)
    flat = 32 * h3 * w3
    rnn_in = hidden_size + n_input_goal
    return {
        "conv1_w": nrm(keys[0], (32, in_ch, 8, 8)),        # PyTorch (Cout,Cin,KH,KW)
        "conv1_b": nrm(keys[1], (32,)),
        "conv2_w": nrm(keys[2], (64, 32, 4, 4)),
        "conv2_b": nrm(keys[3], (64,)),
        "conv3_w": nrm(keys[4], (32, 64, 3, 3)),
        "conv3_b": nrm(keys[5], (32,)),
        "fc_w":    nrm(keys[6], (hidden_size, flat)),      # PyTorch Linear (out,in), in-order (C,OH,OW)
        "fc_b":    nrm(keys[7], (hidden_size,)),
        "gru_w_ih": nrm(keys[8], (3 * hidden_size, rnn_in)),
        "gru_w_hh": nrm(keys[9], (3 * hidden_size, hidden_size)),
        "gru_b_ih": nrm(keys[10], (3 * hidden_size,)),
        "gru_b_hh": nrm(keys[11], (3 * hidden_size,)),
    }


def prepare_params(params, hidden_size, img_hw=(48, 48)):
    """One-time prep: fold /255 into conv1_w, permute conv/fc weights to the NHWC
    patch order, pre-transpose/split GRU weights, cast matmul operands to bf16."""
    def conv_w2d(w, scale=1.0):
        Cout, Cin, KH, KW = w.shape
        w2 = jnp.transpose(w, (2, 3, 1, 0)).reshape(KH * KW * Cin, Cout) * scale
        return w2.astype(jnp.bfloat16)

    h1, w1 = _conv_out(img_hw[0], 8, 4), _conv_out(img_hw[1], 8, 4)
    h2, w2 = _conv_out(h1, 4, 2), _conv_out(w1, 4, 2)
    h3, w3 = _conv_out(h2, 3, 1), _conv_out(w2, 3, 1)

    H = hidden_size
    # Linear weight: (H, C*OH*OW) with (C,OH,OW) order  ->  (OH*OW*C, H) for NHWC flatten.
    fc_w = params["fc_w"].reshape(H, 32, h3, w3).transpose(2, 3, 1, 0)
    fc_w = fc_w.reshape(h3 * w3 * 32, H).astype(jnp.bfloat16)

    w_ih = params["gru_w_ih"]          # (3H, H + n_goal); input concat order [pe, goal]
    w_hh = params["gru_w_hh"]          # (3H, H)
    return {
        "conv1_w": conv_w2d(params["conv1_w"], scale=1.0 / 255.0),  # /255 folded (bias untouched)
        "conv1_b": params["conv1_b"].reshape(1, -1),
        "conv2_w": conv_w2d(params["conv2_w"]),
        "conv2_b": params["conv2_b"].reshape(1, -1),
        "conv3_w": conv_w2d(params["conv3_w"]),
        "conv3_b": params["conv3_b"].reshape(1, -1),
        "fc_w": fc_w,
        "fc_b": params["fc_b"].reshape(1, -1),
        "gru_w_ih_pe": w_ih[:, :H].T.astype(jnp.bfloat16),          # (H, 3H)
        "gru_w_ih_goal": w_ih[:, H:].T.astype(jnp.bfloat16),        # (n_goal, 3H)
        "gru_w_hh": w_hh.T.astype(jnp.bfloat16),                    # (H, 3H)
        "gru_b_ih": params["gru_b_ih"].reshape(1, -1),
        "gru_b_hh": params["gru_b_hh"].reshape(1, -1),
    }


# ----------------------------------------------------------------------------
# Forward (mirrors PointNavBaselineNet.forward)
# ----------------------------------------------------------------------------
_CONVS = (("conv1", 8, 4), ("conv2", 4, 2), ("conv3", 3, 1))   # (name, k, stride)


def pointnav_baseline_forward(prep, observations, rnn_hidden_states,
                              prev_actions, masks):
    """observations: {"rgb": (B,H,W,3) uint8 NHWC, "pointgoal": (B,n_goal) f32}
    rnn_hidden_states: (1,B,hidden) f32; masks: (B,1) f32.
    returns (x, rnn_hidden_states) = ((B,hidden) f32, (1,B,hidden) f32)."""
    del prev_actions  # unused by the reference forward
    goal = observations["pointgoal"].astype(jnp.bfloat16)

    # ---- visual_encoder: NHWC end-to-end; /255 already folded into conv1_w. ----
    # uint8 pixel values 0..255 are exactly representable in bf16.
    x = observations["rgb"].astype(jnp.bfloat16)
    B = x.shape[0]
    for name, k, stride in _CONVS:
        patches, OH, OW = _im2col_nhwc(x, k, stride)
        y = pallas_matmul_bias_relu(patches, prep[name + "_w"], prep[name + "_b"])
        x = y.reshape(B, OH, OW, y.shape[-1])
    feat = x.reshape(B, -1)                       # (B, OH*OW*C), NHWC flatten order

    # ---- fused fc + [perception_embed, goal] concat + GRU step (one kernel) ----
    h0 = rnn_hidden_states[0]                     # (B, hidden)
    h_new = pallas_fc_gru(feat, goal, h0, masks, prep)
    return h_new, h_new[None]                     # (B,H), (1,B,H)


# ----------------------------------------------------------------------------
if __name__ == "__main__":
    key = jax.random.PRNGKey(0)
    k_param, k_rgb, k_goal, k_h = jax.random.split(key, 4)

    B, H_IMG, W_IMG, HIDDEN, N_GOAL = 2, 48, 48, 32, 2

    params = init_params(k_param, HIDDEN, N_GOAL, img_hw=(H_IMG, W_IMG), in_ch=3)
    prep = prepare_params(params, HIDDEN, img_hw=(H_IMG, W_IMG))

    rgb = jax.random.randint(k_rgb, (B, H_IMG, W_IMG, 3), 0, 256,
                             dtype=jnp.int32).astype(jnp.uint8)
    pointgoal = jax.random.normal(k_goal, (B, N_GOAL), jnp.float32)
    observations = {"rgb": rgb, "pointgoal": pointgoal}

    rnn_hidden_states = 0.1 * jax.random.normal(k_h, (1, B, HIDDEN), jnp.float32)
    prev_actions = jnp.zeros((B, 1), jnp.int32)
    masks = jnp.ones((B, 1), jnp.float32)

    forward = jax.jit(pointnav_baseline_forward)
    x_out, h_out = forward(prep, observations, rnn_hidden_states,
                           prev_actions, masks)
    jax.block_until_ready((x_out, h_out))

    assert x_out.shape == (B, HIDDEN)
    assert h_out.shape == (1, B, HIDDEN)
    print("KERNEL_OK")
</pallas_src>

<mosaic_0001>
module attributes {stable_mosaic.version = 11 : i64} {
  func.func @_matmul_bias_relu_kernel(%arg0: i32, %arg1: memref<242x192xbf16, #tpu.memory_space<vmem>>, %arg2: memref<192x32xbf16, #tpu.memory_space<vmem>>, %arg3: memref<1x32xf32, #tpu.memory_space<vmem>>, %arg4: memref<242x32xbf16, #tpu.memory_space<vmem>>) attributes {dimension_semantics = [#tpu.dimension_semantics<parallel>], iteration_bounds = array<i64: 1>, scalar_prefetch = 0 : i64, scratch_operands = 0 : i64, tpu.core_type = #tpu.core_type<tc>, window_params = [{transform_indices = @transform_0, window_bounds = array<i64: 242, 192>}, {pipeline_mode = #tpu.pipeline_mode<synchronous>, transform_indices = @transform_1, window_bounds = array<i64: 192, 32>}, {pipeline_mode = #tpu.pipeline_mode<synchronous>, transform_indices = @transform_2, window_bounds = array<i64: 1, 32>}, {transform_indices = @transform_3, window_bounds = array<i64: 242, 32>}]} {
    %c0 = arith.constant 0 : index
    %c0_0 = arith.constant 0 : index
    %0 = vector.load %arg1[%c0, %c0_0] : memref<242x192xbf16, #tpu.memory_space<vmem>>, vector<242x192xbf16>
    %c0_1 = arith.constant 0 : index
    %c0_2 = arith.constant 0 : index
    %1 = vector.load %arg2[%c0_1, %c0_2] : memref<192x32xbf16, #tpu.memory_space<vmem>>, vector<192x32xbf16>
    %cst = arith.constant dense<0.000000e+00> : vector<242x32xf32>
    %2 = tpu.matmul %0, %1, %cst {dimension_numbers = #tpu.dot_dimension_numbers<[1], [0], [0], [1], [0, 0, 1, 1], [], []>} : vector<242x192xbf16>, vector<192x32xbf16>, vector<242x32xf32> -> vector<242x32xf32>
    %c0_3 = arith.constant 0 : index
    %c0_4 = arith.constant 0 : index
    %3 = vector.load %arg3[%c0_3, %c0_4] : memref<1x32xf32, #tpu.memory_space<vmem>>, vector<1x32xf32>
    %4 = vector.broadcast %3 : vector<1x32xf32> to vector<242x32xf32>
    %5 = arith.addf %2, %4 : vector<242x32xf32>
    %cst_5 = arith.constant 0.000000e+00 : f32
    %6 = vector.broadcast %cst_5 : f32 to vector<242x32xf32>
    %7 = arith.maximumf %5, %6 : vector<242x32xf32>
    %8 = arith.truncf %7 : vector<242x32xf32> to vector<242x32xbf16>
    %c0_6 = arith.constant 0 : index
    %c0_7 = arith.constant 0 : index
    %9 = vector.load %arg4[%c0_6, %c0_7] : memref<242x32xbf16, #tpu.memory_space<vmem>>, vector<242x32xbf16>
    tpu.vector_store %arg4[%c0_6, %c0_7], %8 {strides = array<i32>} : memref<242x32xbf16, #tpu.memory_space<vmem>>, vector<242x32xbf16>,
    return
  }
  func.func @transform_0(%arg0: i32) -> (i32, i32) {
    %c0_i32 = arith.constant 0 : i32
    %c0_i32_0 = arith.constant 0 : i32
    return %arg0, %c0_i32 : i32, i32
  }
  func.func @transform_1(%arg0: i32) -> (i32, i32) {
    %c0_i32 = arith.constant 0 : i32
    %c0_i32_0 = arith.constant 0 : i32
    %c0_i32_1 = arith.constant 0 : i32
    return %c0_i32, %c0_i32_0 : i32, i32
  }
  func.func @transform_2(%arg0: i32) -> (i32, i32) {
    %c0_i32 = arith.constant 0 : i32
    %c0_i32_0 = arith.constant 0 : i32
    %c0_i32_1 = arith.constant 0 : i32
    return %c0_i32, %c0_i32_0 : i32, i32
  }
  func.func @transform_3(%arg0: i32) -> (i32, i32) {
    %c0_i32 = arith.constant 0 : i32
    %c0_i32_0 = arith.constant 0 : i32
    return %arg0, %c0_i32 : i32, i32
  }
}

module attributes {stable_mosaic.version = 11 : i64} {
  func.func @_matmul_bias_relu_kernel(%arg0: i32, %arg1: memref<32x512xbf16, #tpu.memory_space<vmem>>, %arg2: memref<512x64xbf16, #tpu.memory_space<vmem>>, %arg3: memref<1x64xf32, #tpu.memory_space<vmem>>, %arg4: memref<32x64xbf16, #tpu.memory_space<vmem>>) attributes {dimension_semantics = [#tpu.dimension_semantics<parallel>], iteration_bounds = array<i64: 1>, scalar_prefetch = 0 : i64, scratch_operands = 0 : i64, tpu.core_type = #tpu.core_type<tc>, window_params = [{transform_indices = @transform_0, window_bounds = array<i64: 32, 512>}, {pipeline_mode = #tpu.pipeline_mode<synchronous>, transform_indices = @transform_1, window_bounds = array<i64: 512, 64>}, {pipeline_mode = #tpu.pipeline_mode<synchronous>, transform_indices = @transform_2, window_bounds = array<i64: 1, 64>}, {transform_indices = @transform_3, window_bounds = array<i64: 32, 64>}]} {
    %c0 = arith.constant 0 : index
    %c0_0 = arith.constant 0 : index
    %0 = vector.load %arg1[%c0, %c0_0] : memref<32x512xbf16, #tpu.memory_space<vmem>>, vector<32x512xbf16>
    %c0_1 = arith.constant 0 : index
    %c0_2 = arith.constant 0 : index
    %1 = vector.load %arg2[%c0_1, %c0_2] : memref<512x64xbf16, #tpu.memory_space<vmem>>, vector<512x64xbf16>
    %cst = arith.constant dense<0.000000e+00> : vector<32x64xf32>
    %2 = tpu.matmul %0, %1, %cst {dimension_numbers = #tpu.dot_dimension_numbers<[1], [0], [0], [1], [0, 0, 1, 1], [], []>} : vector<32x512xbf16>, vector<512x64xbf16>, vector<32x64xf32> -> vector<32x64xf32>
    %c0_3 = arith.constant 0 : index
    %c0_4 = arith.constant 0 : index
    %3 = vector.load %arg3[%c0_3, %c0_4] : memref<1x64xf32, #tpu.memory_space<vmem>>, vector<1x64xf32>
    %4 = vector.broadcast %3 : vector<1x64xf32> to vector<32x64xf32>
    %5 = arith.addf %2, %4 : vector<32x64xf32>
    %cst_5 = arith.constant 0.000000e+00 : f32
    %6 = vector.broadcast %cst_5 : f32 to vector<32x64xf32>
    %7 = arith.maximumf %5, %6 : vector<32x64xf32>
    %8 = arith.truncf %7 : vector<32x64xf32> to vector<32x64xbf16>
    %c0_6 = arith.constant 0 : index
    %c0_7 = arith.constant 0 : index
    %9 = vector.load %arg4[%c0_6, %c0_7] : memref<32x64xbf16, #tpu.memory_space<vmem>>, vector<32x64xbf16>
    tpu.vector_store %arg4[%c0_6, %c0_7], %8 {strides = array<i32>} : memref<32x64xbf16, #tpu.memory_space<vmem>>, vector<32x64xbf16>,
    return
  }
  func.func @transform_0(%arg0: i32) -> (i32, i32) {
    %c0_i32 = arith.constant 0 : i32
    %c0_i32_0 = arith.constant 0 : i32
    return %arg0, %c0_i32 : i32, i32
  }
  func.func @transform_1(%arg0: i32) -> (i32, i32) {
    %c0_i32 = arith.constant 0 : i32
    %c0_i32_0 = arith.constant 0 : i32
    %c0_i32_1 = arith.constant 0 : i32
    return %c0_i32, %c0_i32_0 : i32, i32
  }
  func.func @transform_2(%arg0: i32) -> (i32, i32) {
    %c0_i32 = arith.constant 0 : i32
    %c0_i32_0 = arith.constant 0 : i32
    %c0_i32_1 = arith.constant 0 : i32
    return %c0_i32, %c0_i32_0 : i32, i32
  }
  func.func @transform_3(%arg0: i32) -> (i32, i32) {
    %c0_i32 = arith.constant 0 : i32
    %c0_i32_0 = arith.constant 0 : i32
    return %arg0, %c0_i32 : i32, i32
  }
}

module attributes {stable_mosaic.version = 11 : i64} {
  func.func @_fc_gru_kernel(%arg0: memref<2x128xbf16, #tpu.memory_space<vmem>>, %arg1: memref<2x2xbf16, #tpu.memory_space<vmem>>, %arg2: memref<2x32xf32, #tpu.memory_space<vmem>>, %arg3: memref<2x1xf32, #tpu.memory_space<vmem>>, %arg4: memref<128x32xbf16, #tpu.memory_space<vmem>>, %arg5: memref<1x32xf32, #tpu.memory_space<vmem>>, %arg6: memref<32x96xbf16, #tpu.memory_space<vmem>>, %arg7: memref<2x96xbf16, #tpu.memory_space<vmem>>, %arg8: memref<32x96xbf16, #tpu.memory_space<vmem>>, %arg9: memref<1x96xf32, #tpu.memory_space<vmem>>, %arg10: memref<1x96xf32, #tpu.memory_space<vmem>>, %arg11: memref<2x32xf32, #tpu.memory_space<vmem>>) attributes {dimension_semantics = [], scalar_prefetch = 0 : i64, scratch_operands = 0 : i64, tpu.core_type = #tpu.core_type<tc>} {
    %c0 = arith.constant 0 : index
    %c0_0 = arith.constant 0 : index
    %0 = vector.load %arg0[%c0, %c0_0] : memref<2x128xbf16, #tpu.memory_space<vmem>>, vector<2x128xbf16>
    %c0_1 = arith.constant 0 : index
    %c0_2 = arith.constant 0 : index
    %1 = vector.load %arg4[%c0_1, %c0_2] : memref<128x32xbf16, #tpu.memory_space<vmem>>, vector<128x32xbf16>
    %cst = arith.constant dense<0.000000e+00> : vector<2x32xf32>
    %2 = tpu.matmul %0, %1, %cst {dimension_numbers = #tpu.dot_dimension_numbers<[1], [0], [0], [1], [0, 0, 1, 1], [], []>} : vector<2x128xbf16>, vector<128x32xbf16>, vector<2x32xf32> -> vector<2x32xf32>
    %c0_3 = arith.constant 0 : index
    %c0_4 = arith.constant 0 : index
    %3 = vector.load %arg5[%c0_3, %c0_4] : memref<1x32xf32, #tpu.memory_space<vmem>>, vector<1x32xf32>
    %4 = vector.broadcast %3 : vector<1x32xf32> to vector<2x32xf32>
    %5 = arith.addf %2, %4 : vector<2x32xf32>
    %cst_5 = arith.constant 0.000000e+00 : f32
    %6 = vector.broadcast %cst_5 : f32 to vector<2x32xf32>
    %7 = arith.maximumf %5, %6 : vector<2x32xf32>
    %c0_6 = arith.constant 0 : index
    %c0_7 = arith.constant 0 : index
    %8 = vector.load %arg2[%c0_6, %c0_7] : memref<2x32xf32, #tpu.memory_space<vmem>>, vector<2x32xf32>
    %c0_8 = arith.constant 0 : index
    %c0_9 = arith.constant 0 : index
    %9 = vector.load %arg3[%c0_8, %c0_9] : memref<2x1xf32, #tpu.memory_space<vmem>>, vector<2x1xf32>
    %10 = vector.broadcast %9 : vector<2x1xf32> to vector<2x32xf32>
    %11 = arith.mulf %8, %10 : vector<2x32xf32>
    %12 = arith.truncf %7 : vector<2x32xf32> to vector<2x32xbf16>
    %c0_10 = arith.constant 0 : index
    %c0_11 = arith.constant 0 : index
    %13 = vector.load %arg6[%c0_10, %c0_11] : memref<32x96xbf16, #tpu.memory_space<vmem>>, vector<32x96xbf16>
    %cst_12 = arith.constant dense<0.000000e+00> : vector<2x96xf32>
    %14 = tpu.matmul %12, %13, %cst_12 {dimension_numbers = #tpu.dot_dimension_numbers<[1], [0], [0], [1], [0, 0, 1, 1], [], []>} : vector<2x32xbf16>, vector<32x96xbf16>, vector<2x96xf32> -> vector<2x96xf32>
    %c0_13 = arith.constant 0 : index
    %c0_14 = arith.constant 0 : index
    %15 = vector.load %arg1[%c0_13, %c0_14] : memref<2x2xbf16, #tpu.memory_space<vmem>>, vector<2x2xbf16>
    %c0_15 = arith.constant 0 : index
    %c0_16 = arith.constant 0 : index
    %16 = vector.load %arg7[%c0_15, %c0_16] : memref<2x96xbf16, #tpu.memory_space<vmem>>, vector<2x96xbf16>
    %cst_17 = arith.constant dense<0.000000e+00> : vector<2x96xf32>
    %17 = tpu.matmul %15, %16, %cst_17 {dimension_numbers = #tpu.dot_dimension_numbers<[1], [0], [0], [1], [0, 0, 1, 1], [], []>} : vector<2x2xbf16>, vector<2x96xbf16>, vector<2x96xf32> -> vector<2x96xf32>
    %18 = arith.addf %14, %17 : vector<2x96xf32>
    %c0_18 = arith.constant 0 : index
    %c0_19 = arith.constant 0 : index
    %19 = vector.load %arg9[%c0_18, %c0_19] : memref<1x96xf32, #tpu.memory_space<vmem>>, vector<1x96xf32>
    %20 = vector.broadcast %19 : vector<1x96xf32> to vector<2x96xf32>
    %21 = arith.addf %18, %20 : vector<2x96xf32>
    %22 = arith.truncf %11 : vector<2x32xf32> to vector<2x32xbf16>
    %c0_20 = arith.constant 0 : index
    %c0_21 = arith.constant 0 : index
    %23 = vector.load %arg8[%c0_20, %c0_21] : memref<32x96xbf16, #tpu.memory_space<vmem>>, vector<32x96xbf16>
    %cst_22 = arith.constant dense<0.000000e+00> : vector<2x96xf32>
    %24 = tpu.matmul %22, %23, %cst_22 {dimension_numbers = #tpu.dot_dimension_numbers<[1], [0], [0], [1], [0, 0, 1, 1], [], []>} : vector<2x32xbf16>, vector<32x96xbf16>, vector<2x96xf32> -> vector<2x96xf32>
    %c0_23 = arith.constant 0 : index
    %c0_24 = arith.constant 0 : index
    %25 = vector.load %arg10[%c0_23, %c0_24] : memref<1x96xf32, #tpu.memory_space<vmem>>, vector<1x96xf32>
    %26 = vector.broadcast %25 : vector<1x96xf32> to vector<2x96xf32>
    %27 = arith.addf %24, %26 : vector<2x96xf32>
    %28 = vector.extract_strided_slice %21 {offsets = [0, 0], sizes = [2, 32], strides = [1, 1]} : vector<2x96xf32> to vector<2x32xf32>
    %29 = vector.extract_strided_slice %27 {offsets = [0, 0], sizes = [2, 32], strides = [1, 1]} : vector<2x96xf32> to vector<2x32xf32>
    %30 = arith.addf %28, %29 : vector<2x32xf32>
    %31 = arith.negf %30 : vector<2x32xf32>
    %32 = math.exp %31 : vector<2x32xf32>
    %cst_25 = arith.constant 1.000000e+00 : f32
    %33 = vector.broadcast %cst_25 : f32 to vector<2x32xf32>
    %34 = arith.addf %33, %32 : vector<2x32xf32>
    %35 = arith.divf %33, %34 : vector<2x32xf32>
    %36 = vector.extract_strided_slice %21 {offsets = [0, 32], sizes = [2, 32], strides = [1, 1]} : vector<2x96xf32> to vector<2x32xf32>
    %37 = vector.extract_strided_slice %27 {offsets = [0, 32], sizes = [2, 32], strides = [1, 1]} : vector<2x96xf32> to vector<2x32xf32>
    %38 = arith.addf %36, %37 : vector<2x32xf32>
    %39 = arith.negf %38 : vector<2x32xf32>
    %40 = math.exp %39 : vector<2x32xf32>
    %cst_26 = arith.constant 1.000000e+00 : f32
    %41 = vector.broadcast %cst_26 : f32 to vector<2x32xf32>
    %42 = arith.addf %41, %40 : vector<2x32xf32>
    %43 = arith.divf %41, %42 : vector<2x32xf32>
    %44 = vector.extract_strided_slice %21 {offsets = [0, 64], sizes = [2, 32], strides = [1, 1]} : vector<2x96xf32> to vector<2x32xf32>
    %45 = vector.extract_strided_slice %27 {offsets = [0, 64], sizes = [2, 32], strides = [1, 1]} : vector<2x96xf32> to vector<2x32xf32>
    %46 = arith.mulf %35, %45 : vector<2x32xf32>
    %47 = arith.addf %44, %46 : vector<2x32xf32>
    %48 = math.tanh %47 : vector<2x32xf32>
    %cst_27 = arith.constant 1.000000e+00 : f32
    %49 = vector.broadcast %cst_27 : f32 to vector<2x32xf32>
    %50 = arith.subf %49, %43 : vector<2x32xf32>
    %51 = arith.mulf %50, %48 : vector<2x32xf32>
    %52 = arith.mulf %43, %11 : vector<2x32xf32>
    %53 = arith.addf %51, %52 : vector<2x32xf32>
    %c0_28 = arith.constant 0 : index
    %c0_29 = arith.constant 0 : index
    %54 = vector.load %arg11[%c0_28, %c0_29] : memref<2x32xf32, #tpu.memory_space<vmem>>, vector<2x32xf32>
    tpu.vector_store %arg11[%c0_28, %c0_29], %53 {strides = array<i32>} : memref<2x32xf32, #tpu.memory_space<vmem>>, vector<2x32xf32>,
    return
  }
}

module attributes {stable_mosaic.version = 11 : i64} {
  func.func @_matmul_bias_relu_kernel(%arg0: i32, %arg1: memref<8x576xbf16, #tpu.memory_space<vmem>>, %arg2: memref<576x32xbf16, #tpu.memory_space<vmem>>, %arg3: memref<1x32xf32, #tpu.memory_space<vmem>>, %arg4: memref<8x32xbf16, #tpu.memory_space<vmem>>) attributes {dimension_semantics = [#tpu.dimension_semantics<parallel>], iteration_bounds = array<i64: 1>, scalar_prefetch = 0 : i64, scratch_operands = 0 : i64, tpu.core_type = #tpu.core_type<tc>, window_params = [{transform_indices = @transform_0, window_bounds = array<i64: 8, 576>}, {pipeline_mode = #tpu.pipeline_mode<synchronous>, transform_indices = @transform_1, window_bounds = array<i64: 576, 32>}, {pipeline_mode = #tpu.pipeline_mode<synchronous>, transform_indices = @transform_2, window_bounds = array<i64: 1, 32>}, {transform_indices = @transform_3, window_bounds = array<i64: 8, 32>}]} {
    %c0 = arith.constant 0 : index
    %c0_0 = arith.constant 0 : index
    %0 = vector.load %arg1[%c0, %c0_0] : memref<8x576xbf16, #tpu.memory_space<vmem>>, vector<8x576xbf16>
    %c0_1 = arith.constant 0 : index
    %c0_2 = arith.constant 0 : index
    %1 = vector.load %arg2[%c0_1, %c0_2] : memref<576x32xbf16, #tpu.memory_space<vmem>>, vector<576x32xbf16>
    %cst = arith.constant dense<0.000000e+00> : vector<8x32xf32>
    %2 = tpu.matmul %0, %1, %cst {dimension_numbers = #tpu.dot_dimension_numbers<[1], [0], [0], [1], [0, 0, 1, 1], [], []>} : vector<8x576xbf16>, vector<576x32xbf16>, vector<8x32xf32> -> vector<8x32xf32>
    %c0_3 = arith.constant 0 : index
    %c0_4 = arith.constant 0 : index
    %3 = vector.load %arg3[%c0_3, %c0_4] : memref<1x32xf32, #tpu.memory_space<vmem>>, vector<1x32xf32>
    %4 = vector.broadcast %3 : vector<1x32xf32> to vector<8x32xf32>
    %5 = arith.addf %2, %4 : vector<8x32xf32>
    %cst_5 = arith.constant 0.000000e+00 : f32
    %6 = vector.broadcast %cst_5 : f32 to vector<8x32xf32>
    %7 = arith.maximumf %5, %6 : vector<8x32xf32>
    %8 = arith.truncf %7 : vector<8x32xf32> to vector<8x32xbf16>
    %c0_6 = arith.constant 0 : index
    %c0_7 = arith.constant 0 : index
    %9 = vector.load %arg4[%c0_6, %c0_7] : memref<8x32xbf16, #tpu.memory_space<vmem>>, vector<8x32xbf16>
    tpu.vector_store %arg4[%c0_6, %c0_7], %8 {strides = array<i32>} : memref<8x32xbf16, #tpu.memory_space<vmem>>, vector<8x32xbf16>,
    return
  }
  func.func @transform_0(%arg0: i32) -> (i32, i32) {
    %c0_i32 = arith.constant 0 : i32
    %c0_i32_0 = arith.constant 0 : i32
    return %arg0, %c0_i32 : i32, i32
  }
  func.func @transform_1(%arg0: i32) -> (i32, i32) {
    %c0_i32 = arith.constant 0 : i32
    %c0_i32_0 = arith.constant 0 : i32
    %c0_i32_1 = arith.constant 0 : i32
    return %c0_i32, %c0_i32_0 : i32, i32
  }
  func.func @transform_2(%arg0: i32) -> (i32, i32) {
    %c0_i32 = arith.constant 0 : i32
    %c0_i32_0 = arith.constant 0 : i32
    %c0_i32_1 = arith.constant 0 : i32
    return %c0_i32, %c0_i32_0 : i32, i32
  }
  func.func @transform_3(%arg0: i32) -> (i32, i32) {
    %c0_i32 = arith.constant 0 : i32
    %c0_i32_0 = arith.constant 0 : i32
    return %arg0, %c0_i32 : i32, i32
  }
}

</mosaic_0001>

<llo_original>
// kernel: pointnav_baseline_forward.4
$region0: #{pointnav_baseline_forward.4}
  #allocation0 [shape = 'u32[]', space=smem, size = 0x4, offset = 0x4, fixed_abs, tag = 'smem constant byte address 0x4 - core index']
  #allocation1 [shape = 'u32[144,128]{1,0:T(1,128)}', space=vmem, size = 0x12000, scoped, tag = 'internal scratch']
  %s0 = inlined_call_operand.vmem [shape: bf16[242,192], index: 0, kind: input, shape index: {}]
  %s1 = inlined_call_operand.vmem [shape: bf16[192,32], index: 1, kind: input, shape index: {}]
  %s2 = inlined_call_operand.vmem [shape: f32[1,32], index: 2, kind: input, shape index: {}]
  %s3 = inlined_call_operand.vmem [shape: bf16[242,32], index: 3, kind: output, shape index: {}]
  %s4 = sld [smem:[#allocation0]]
  $region22: #{pointnav_baseline_forward.4} parent=0
    _
  %s6 = ssub.s32 1, %s4
  %s7 = scalar_select 0, %s6, %s4
  // Predicated region
  $region2: #{pointnav_baseline_forward.4} parent=0 // pred_check
    _
  $region3: #{pointnav_baseline_forward.4} parent=0 // pred_check_branch
    %9 = sbr.rel (0) target = $region5
  $region4: #{pointnav_baseline_forward.4} parent=0 // pred_region
    _
  $region5: #{pointnav_baseline_forward.4} parent=0 // pred_fallthru
    _
  // Predicated region
  $region6: #{pointnav_baseline_forward.4} parent=0 // pred_check
    _
  $region7: #{pointnav_baseline_forward.4} parent=0 // pred_check_branch
    %11 = sbr.rel (0) target = $region9
  $region8: #{pointnav_baseline_forward.4} parent=0 // pred_region
    _
  $region9: #{pointnav_baseline_forward.4} parent=0 // pred_fallthru
    _
  // Predicated region
  $region10: #{pointnav_baseline_forward.4} parent=0 // pred_check
    _
  $region11: #{pointnav_baseline_forward.4} parent=0 // pred_check_branch
    %13 = sbr.rel (0) target = $region13
  $region12: #{pointnav_baseline_forward.4} parent=0 // pred_region
    _
  $region13: #{pointnav_baseline_forward.4} parent=0 // pred_fallthru
    _
  %v15 = vld [vmem:[%s0] sm:$0xff]
  %v16 = vld [vmem:[%s0 + $0x8] sm:$0xff]
  %v17 = vld [vmem:[%s0 + $0x10] sm:$0xff]
  %v18 = vld [vmem:[%s0 + $0x18] sm:$0xff]
  %v19 = vld [vmem:[%s0 + $0x20] sm:$0xff]
  %v20 = vld [vmem:[%s0 + $0x28] sm:$0xff]
  %v21 = vld [vmem:[%s0 + $0x30] sm:$0xff]
  %v22 = vld [vmem:[%s0 + $0x38] sm:$0xff]
  %v23 = vld [vmem:[%s0 + $0x40] sm:$0xff]
  %v24 = vld [vmem:[%s0 + $0x48] sm:$0xff]
  %v25 = vld [vmem:[%s0 + $0x50] sm:$0xff]
  %v26 = vld [vmem:[%s0 + $0x58] sm:$0xff]
  %v27 = vld [vmem:[%s0 + $0x60] sm:$0xff]
  %v28 = vld [vmem:[%s0 + $0x68] sm:$0xff]
  %v29 = vld [vmem:[%s0 + $0x70] sm:$0xff]
  %v30 = vld [vmem:[%s0 + $0x78] sm:$0xff]
  %v31 = vld [vmem:[%s0 + $0x80] sm:$0xff]
  %v32 = vld [vmem:[%s0 + $0x88] sm:$0xff]
  %v33 = vld [vmem:[%s0 + $0x90] sm:$0xff]
  %v34 = vld [vmem:[%s0 + $0x98] sm:$0xff]
  %v35 = vld [vmem:[%s0 + $0xa0] sm:$0xff]
  %v36 = vld [vmem:[%s0 + $0xa8] sm:$0xff]
  %v37 = vld [vmem:[%s0 + $0xb0] sm:$0xff]
  %v38 = vld [vmem:[%s0 + $0xb8] sm:$0xff]
  %v39 = vld [vmem:[%s0 + $0xc0] sm:$0xff]
  %v40 = vld [vmem:[%s0 + $0xc8] sm:$0xff]
  %v41 = vld [vmem:[%s0 + $0xd0] sm:$0xff]
  %v42 = vld [vmem:[%s0 + $0xd8] sm:$0xff]
  %v43 = vld [vmem:[%s0 + $0xe0] sm:$0xff]
  %v44 = vld [vmem:[%s0 + $0xe8] sm:$0xff]
  %v45 = vld [vmem:[%s0 + $0xf0] sm:$0x11]
  %v46 = vld [vmem:[%s1] sm:$0xf]
  %v47 = vld [vmem:[%s1 + $0x4] sm:$0xf]
  %v48 = vld [vmem:[%s1 + $0x8] sm:$0xf]
  %v49 = vld [vmem:[%s1 + $0xc] sm:$0xf]
  %v50 = vld [vmem:[%s1 + $0x10] sm:$0xf]
  %v51 = vld [vmem:[%s1 + $0x14] sm:$0xf]
  %v52 = vld [vmem:[%s1 + $0x18] sm:$0xf]
  %v53 = vld [vmem:[%s1 + $0x1c] sm:$0xf]
  %v54 = vld [vmem:[%s1 + $0x20] sm:$0xf]
  %v55 = vld [vmem:[%s1 + $0x24] sm:$0xf]
  %v56 = vld [vmem:[%s1 + $0x28] sm:$0xf]
  %v57 = vld [vmem:[%s1 + $0x2c] sm:$0xf]
  %v58 = vld [vmem:[%s1 + $0x30] sm:$0xf]
  %v59 = vld [vmem:[%s1 + $0x34] sm:$0xf]
  %v60 = vld [vmem:[%s1 + $0x38] sm:$0xf]
  %v61 = vld [vmem:[%s1 + $0x3c] sm:$0xf]
  %v62 = vld [vmem:[%s1 + $0x40] sm:$0xf]
  %v63 = vld [vmem:[%s1 + $0x44] sm:$0xf]
  %v64 = vld [vmem:[%s1 + $0x48] sm:$0xf]
  %v65 = vld [vmem:[%s1 + $0x4c] sm:$0xf]
  %v66 = vld [vmem:[%s1 + $0x50] sm:$0xf]
  %v67 = vld [vmem:[%s1 + $0x54] sm:$0xf]
  %v68 = vld [vmem:[%s1 + $0x58] sm:$0xf]
  %v69 = vld [vmem:[%s1 + $0x5c] sm:$0xf]
  %v70 = vld [vmem:[%s2] sm:$0x1]
  %v72 = vlaneseq
  %v73 = vshrl.u32 %v72, 7
  %v74 = vsub.s32 0, %v73
  %v75 = vrot.slane %v70, %v74
  %v108 = vunpack.c.l.b16 %v15
  %v109 = vunpack.c.h.b16 %v15
  %v110 = vunpack.c.l.b16 %v16
  %v111 = vunpack.c.h.b16 %v16
  %v112 = vunpack.c.l.b16 %v17
  %v113 = vunpack.c.h.b16 %v17
  %v114 = vunpack.c.l.b16 %v18
  %v115 = vunpack.c.h.b16 %v18
  %v116 = vunpack.c.l.b16 %v19
  %v117 = vunpack.c.h.b16 %v19
  %v118 = vunpack.c.l.b16 %v20
  %v119 = vunpack.c.h.b16 %v20
  %v120 = vunpack.c.l.b16 %v21
  %v121 = vunpack.c.h.b16 %v21
  %v122 = vunpack.c.l.b16 %v22
  %v123 = vunpack.c.h.b16 %v22
  %v124 = vunpack.c.l.b16 %v23
  %v125 = vunpack.c.h.b16 %v23
  %v126 = vunpack.c.l.b16 %v24
  %v127 = vunpack.c.h.b16 %v24
  %v128 = vunpack.c.l.b16 %v25
  %v129 = vunpack.c.h.b16 %v25
  %v130 = vunpack.c.l.b16 %v26
  %v131 = vunpack.c.h.b16 %v26
  %v132 = vunpack.c.l.b16 %v27
  %v133 = vunpack.c.h.b16 %v27
  %v134 = vunpack.c.l.b16 %v28
  %v135 = vunpack.c.h.b16 %v28
  %v136 = vunpack.c.l.b16 %v29
  %v137 = vunpack.c.h.b16 %v29
  %v138 = vunpack.c.l.b16 %v30
  %v139 = vunpack.c.h.b16 %v30
  %v140 = vunpack.c.l.b16 %v31
  %v141 = vunpack.c.h.b16 %v31
  %v142 = vunpack.c.l.b16 %v32
  %v143 = vunpack.c.h.b16 %v32
  %v144 = vunpack.c.l.b16 %v33
  %v145 = vunpack.c.h.b16 %v33
  %v146 = vunpack.c.l.b16 %v34
  %v147 = vunpack.c.h.b16 %v34
  %v148 = vunpack.c.l.b16 %v35
  %v149 = vunpack.c.h.b16 %v35
  %v150 = vunpack.c.l.b16 %v36
  %v151 = vunpack.c.h.b16 %v36
  %v152 = vunpack.c.l.b16 %v37
  %v153 = vunpack.c.h.b16 %v37
  %v154 = vunpack.c.l.b16 %v38
  %v155 = vunpack.c.h.b16 %v38
  %v156 = vunpack.c.l.b16 %v39
  %v157 = vunpack.c.h.b16 %v39
  %v158 = vunpack.c.l.b16 %v40
  %v159 = vunpack.c.h.b16 %v40
  %v160 = vunpack.c.l.b16 %v41
  %v161 = vunpack.c.h.b16 %v41
  %v162 = vunpack.c.l.b16 %v42
  %v163 = vunpack.c.h.b16 %v42
  %v164 = vunpack.c.l.b16 %v43
  %v165 = vunpack.c.h.b16 %v43
  %v166 = vunpack.c.l.b16 %v44
  %v167 = vunpack.c.h.b16 %v44
  %v168 = vunpack.c.l.b16 %v45
  %v169 = vunpack.c.h.b16 %v45
  %v170 = vpack.c.b16 %v110, %v108
  %v171 = vpack.c.b16 %v111, %v109
  %v172 = vpack.c.b16 %v114, %v112
  %v173 = vpack.c.b16 %v115, %v113
  %v174 = vpack.c.b16 %v118, %v116
  %v175 = vpack.c.b16 %v119, %v117
  %v176 = vpack.c.b16 %v122, %v120
  %v177 = vpack.c.b16 %v123, %v121
  %v178 = vpack.c.b16 %v126, %v124
  %v179 = vpack.c.b16 %v127, %v125
  %v180 = vpack.c.b16 %v130, %v128
  %v181 = vpack.c.b16 %v131, %v129
  %v182 = vpack.c.b16 %v134, %v132
  %v183 = vpack.c.b16 %v135, %v133
  %v184 = vpack.c.b16 %v138, %v136
  %v185 = vpack.c.b16 %v139, %v137
  %v186 = vpack.c.b16 %v142, %v140
  %v187 = vpack.c.b16 %v143, %v141
  %v188 = vpack.c.b16 %v146, %v144
  %v189 = vpack.c.b16 %v147, %v145
  %v190 = vpack.c.b16 %v150, %v148
  %v191 = vpack.c.b16 %v151, %v149
  %v192 = vpack.c.b16 %v154, %v152
  %v193 = vpack.c.b16 %v155, %v153
  %v194 = vpack.c.b16 %v158, %v156
  %v195 = vpack.c.b16 %v159, %v157
  %v196 = vpack.c.b16 %v162, %v160
  %v197 = vpack.c.b16 %v163, %v161
  %v198 = vpack.c.b16 %v166, %v164
  %v199 = vpack.c.b16 %v167, %v165
  %v200 = vpack.c.b16 %v168, %v168
  %v201 = vpack.c.b16 %v169, %v169
  %v242 = vunpack.c.l.b16 %v46
  %v243 = vunpack.c.l.b16 %v47
  %v244 = vunpack.c.l.b16 %v48
  %v245 = vunpack.c.l.b16 %v49
  %v246 = vunpack.c.l.b16 %v50
  %v247 = vunpack.c.l.b16 %v51
  %v248 = vunpack.c.l.b16 %v52
  %v249 = vunpack.c.l.b16 %v53
  %v250 = vunpack.c.l.b16 %v54
  %v251 = vunpack.c.l.b16 %v55
  %v252 = vunpack.c.l.b16 %v56
  %v253 = vunpack.c.l.b16 %v57
  %v254 = vunpack.c.l.b16 %v58
  %v255 = vunpack.c.l.b16 %v59
  %v256 = vunpack.c.l.b16 %v60
  %v257 = vunpack.c.l.b16 %v61
  %v258 = vunpack.c.l.b16 %v62
  %v259 = vunpack.c.l.b16 %v63
  %v260 = vunpack.c.l.b16 %v64
  %v261 = vunpack.c.l.b16 %v65
  %v262 = vunpack.c.l.b16 %v66
  %v263 = vunpack.c.l.b16 %v67
  %v264 = vunpack.c.l.b16 %v68
  %v265 = vunpack.c.l.b16 %v69
  %v266 = vpack.c.b16 %v243, %v242
  %v267 = vpack.c.b16 %v245, %v244
  %v268 = vpack.c.b16 %v247, %v246
  %v269 = vpack.c.b16 %v249, %v248
  %v270 = vpack.c.b16 %v251, %v250
  %v271 = vpack.c.b16 %v253, %v252
  %v272 = vpack.c.b16 %v255, %v254
  %v273 = vpack.c.b16 %v257, %v256
  %v274 = vpack.c.b16 %v259, %v258
  %v275 = vpack.c.b16 %v261, %v260
  %v276 = vpack.c.b16 %v263, %v262
  %v277 = vpack.c.b16 %v265, %v264
  %vm290 = vcmask 523264
  %v292 = vsel %vm290, %v171, 0
  %v295 = vsel %vm290, %v173, 0
  %v298 = vsel %vm290, %v175, 0
  %v301 = vsel %vm290, %v177, 0
  %v304 = vsel %vm290, %v179, 0
  %v307 = vsel %vm290, %v181, 0
  %v310 = vsel %vm290, %v183, 0
  %v313 = vsel %vm290, %v185, 0
  %v316 = vsel %vm290, %v187, 0
  %v319 = vsel %vm290, %v189, 0
  %v322 = vsel %vm290, %v191, 0
  %v325 = vsel %vm290, %v193, 0
  %v328 = vsel %vm290, %v195, 0
  %v331 = vsel %vm290, %v197, 0
  %v334 = vsel %vm290, %v199, 0
  %v337 = vsel %vm290, %v201, 0
  %339 = vmatprep.subr.bf16.mxu0 0
  %340 = vmatpush1.bf16.msra.mxu0 %v273
  %341 = vmatprep.subr.bf16.mxu0 0
  %342 = vmatpush1.bf16.msra.mxu0 %v272
  %343 = vmatprep.subr.bf16.mxu0 0
  %344 = vmatpush1.bf16.msra.mxu0 %v271
  %345 = vmatprep.subr.bf16.mxu0 0
  %346 = vmatpush1.bf16.msra.mxu0 %v270
  %347 = vmatprep.subr.bf16.mxu0 0
  %348 = vmatpush1.bf16.msra.mxu0 %v269
  %349 = vmatprep.subr.bf16.mxu0 0
  %350 = vmatpush1.bf16.msra.mxu0 %v268
  %351 = vmatprep.subr.bf16.mxu0 0
  %352 = vmatpush1.bf16.msra.mxu0 %v267
  %353 = vmatprep.subr.bf16.mxu0 0
  %354 = vmatpush1.bf16.msra.mxu0 %v266
  %355 = vmatprep.subr.bf16.mxu0 0
  %356 = vmatpush2.bf16.msra.mxu0 0
  %357 = vmatprep.subr.bf16.mxu0 0
  %358 = vmatpush2.bf16.msra.mxu0 0
  %359 = vmatprep.subr.bf16.mxu0 0
  %360 = vmatpush2.bf16.msra.mxu0 0
  %361 = vmatprep.subr.bf16.mxu0 0
  %362 = vmatpush2.bf16.msra.mxu0 0
  %363 = vmatprep.subr.bf16.mxu0 0
  %364 = vmatpush2.bf16.msra.mxu0 %v277
  %365 = vmatprep.subr.bf16.mxu0 0
  %366 = vmatpush2.bf16.msra.mxu0 %v276
  %367 = vmatprep.subr.bf16.mxu0 0
  %368 = vmatpush2.bf16.msra.mxu0 %v275
  %369 = vmatprep.subr.bf16.mxu0 0
  %370 = vmatpush2.bf16.msra.mxu0 %v274
  %371 = vmatprep.mubr.bf16.mxu0 %v292
  %372 = vmatmul.mubr.bf16.gmra.mxu0 %v170
  %v373 = vpop.f32.mrf.mxu0
  %v374 = vadd.f32 %v75, %v373
  %v375 = vpop.f32.mrf.mxu0
  %v376 = vpop.f32.mrf.mxu0
  %v377 = vadd.f32 %v75, %v376
  %v378 = vpop.f32.mrf.mxu0
  %379 = vmatprep.mubr.bf16.mxu0 %v295
  %380 = vmatmul.mubr.bf16.gmra.mxu0 %v172
  %v381 = vpop.f32.mrf.mxu0
  %v382 = vadd.f32 %v75, %v381
  %v383 = vpop.f32.mrf.mxu0
  %v384 = vpop.f32.mrf.mxu0
  %v385 = vadd.f32 %v75, %v384
  %v386 = vpop.f32.mrf.mxu0
  %387 = vmatprep.mubr.bf16.mxu0 %v298
  %388 = vmatmul.mubr.bf16.gmra.mxu0 %v174
  %v389 = vpop.f32.mrf.mxu0
  %v390 = vadd.f32 %v75, %v389
  %v391 = vpop.f32.mrf.mxu0
  %v392 = vpop.f32.mrf.mxu0
  %v393 = vadd.f32 %v75, %v392
  %v394 = vpop.f32.mrf.mxu0
  %395 = vmatprep.mubr.bf16.mxu0 %v301
  %396 = vmatmul.mubr.bf16.gmra.mxu0 %v176
  %v397 = vpop.f32.mrf.mxu0
  %v398 = vadd.f32 %v75, %v397
  %v399 = vpop.f32.mrf.mxu0
  %v400 = vpop.f32.mrf.mxu0
  %v401 = vadd.f32 %v75, %v400
  %v402 = vpop.f32.mrf.mxu0
  %403 = vmatprep.mubr.bf16.mxu0 %v304
  %404 = vmatmul.mubr.bf16.gmra.mxu0 %v178
  %v405 = vpop.f32.mrf.mxu0
  %v406 = vadd.f32 %v75, %v405
  %v407 = vpop.f32.mrf.mxu0
  %v408 = vpop.f32.mrf.mxu0
  %v409 = vadd.f32 %v75, %v408
  %v410 = vpop.f32.mrf.mxu0
  %411 = vmatprep.mubr.bf16.mxu0 %v307
  %412 = vmatmul.mubr.bf16.gmra.mxu0 %v180
  %v413 = vpop.f32.mrf.mxu0
  %v414 = vadd.f32 %v75, %v413
  %v415 = vpop.f32.mrf.mxu0
  %v416 = vpop.f32.mrf.mxu0
  %v417 = vadd.f32 %v75, %v416
  %v418 = vpop.f32.mrf.mxu0
  %419 = vmatprep.mubr.bf16.mxu0 %v310
  %420 = vmatmul.mubr.bf16.gmra.mxu0 %v182
  %v421 = vpop.f32.mrf.mxu0
  %v422 = vadd.f32 %v75, %v421
  %v423 = vpop.f32.mrf.mxu0
  %v424 = vpop.f32.mrf.mxu0
  %v425 = vadd.f32 %v75, %v424
  %v426 = vpop.f32.mrf.mxu0
  %427 = vmatprep.mubr.bf16.mxu0 %v313
  %428 = vmatmul.mubr.bf16.gmra.mxu0 %v184
  %v429 = vpop.f32.mrf.mxu0
  %v430 = vadd.f32 %v75, %v429
  %v431 = vpop.f32.mrf.mxu0
  %v432 = vpop.f32.mrf.mxu0
  %v433 = vadd.f32 %v75, %v432
  %v434 = vpop.f32.mrf.mxu0
  %435 = vmatprep.mubr.bf16.mxu0 %v316
  %436 = vmatmul.mubr.bf16.gmra.mxu0 %v186
  %v437 = vpop.f32.mrf.mxu0
  %v438 = vadd.f32 %v75, %v437
  %v439 = vpop.f32.mrf.mxu0
  %v440 = vpop.f32.mrf.mxu0
  %v441 = vadd.f32 %v75, %v440
  %v442 = vpop.f32.mrf.mxu0
  %443 = vmatprep.mubr.bf16.mxu0 %v319
  %444 = vmatmul.mubr.bf16.gmra.mxu0 %v188
  %v445 = vpop.f32.mrf.mxu0
  %v446 = vadd.f32 %v75, %v445
  %v447 = vpop.f32.mrf.mxu0
  %v448 = vpop.f32.mrf.mxu0
  %v449 = vadd.f32 %v75, %v448
  %v450 = vpop.f32.mrf.mxu0
  %451 = vmatprep.mubr.bf16.mxu0 %v322
  %452 = vmatmul.mubr.bf16.gmra.mxu0 %v190
  %v453 = vpop.f32.mrf.mxu0
  %v454 = vadd.f32 %v75, %v453
  %v455 = vpop.f32.mrf.mxu0
  %v456 = vpop.f32.mrf.mxu0
  %v457 = vadd.f32 %v75, %v456
  %v458 = vpop.f32.mrf.mxu0
  %459 = vmatprep.mubr.bf16.mxu0 %v325
  %460 = vmatmul.mubr.bf16.gmra.mxu0 %v192
  %v461 = vpop.f32.mrf.mxu0
  %v462 = vadd.f32 %v75, %v461
  %v463 = vpop.f32.mrf.mxu0
  %v464 = vpop.f32.mrf.mxu0
  %v465 = vadd.f32 %v75, %v464
  %v466 = vpop.f32.mrf.mxu0
  %467 = vmatprep.mubr.bf16.mxu0 %v328
  %468 = vmatmul.mubr.bf16.gmra.mxu0 %v194
  %v469 = vpop.f32.mrf.mxu0
  %v470 = vadd.f32 %v75, %v469
  %v471 = vpop.f32.mrf.mxu0
  %v472 = vpop.f32.mrf.mxu0
  %v473 = vadd.f32 %v75, %v472
  %v474 = vpop.f32.mrf.mxu0
  %475 = vmatprep.mubr.bf16.mxu0 %v331
  %476 = vmatmul.mubr.bf16.gmra.mxu0 %v196
  %v477 = vpop.f32.mrf.mxu0
  %v478 = vadd.f32 %v75, %v477
  %v479 = vpop.f32.mrf.mxu0
  %v480 = vpop.f32.mrf.mxu0
  %v481 = vadd.f32 %v75, %v480
  %v482 = vpop.f32.mrf.mxu0
  %483 = vmatprep.mubr.bf16.mxu0 %v334
  %484 = vmatmul.mubr.bf16.gmra.mxu0 %v198
  %v485 = vpop.f32.mrf.mxu0
  %v486 = vadd.f32 %v75, %v485
  %v487 = vpop.f32.mrf.mxu0
  %v488 = vpop.f32.mrf.mxu0
  %v489 = vadd.f32 %v75, %v488
  %v490 = vpop.f32.mrf.mxu0
  %491 = vmatprep.mubr.bf16.mxu0 %v337
  %492 = vmatmul.mubr.bf16.gmra.mxu0 %v200
  %v493 = vpop.f32.mrf.mxu0
  %v494 = vadd.f32 %v75, %v493
  %v495 = vpop.f32.mrf.mxu0
  %v496 = vpop.f32.mrf.mxu0
  %v497 = vpop.f32.mrf.mxu0
  %498 = vdwg.mxu0
  %v499 = vmax.f32 %v374, 0.0
  %v500 = vmax.f32 %v377, 0.0
  %v501 = vmax.f32 %v382, 0.0
  %v502 = vmax.f32 %v385, 0.0
  %v503 = vmax.f32 %v390, 0.0
  %v504 = vmax.f32 %v393, 0.0
  %v505 = vmax.f32 %v398, 0.0
  %v506 = vmax.f32 %v401, 0.0
  %v507 = vmax.f32 %v406, 0.0
  %v508 = vmax.f32 %v409, 0.0
  %v509 = vmax.f32 %v414, 0.0
  %v510 = vmax.f32 %v417, 0.0
  %v511 = vmax.f32 %v422, 0.0
  %v512 = vmax.f32 %v425, 0.0
  %v513 = vmax.f32 %v430, 0.0
  %v514 = vmax.f32 %v433, 0.0
  %v515 = vmax.f32 %v438, 0.0
  %v516 = vmax.f32 %v441, 0.0
  %v517 = vmax.f32 %v446, 0.0
  %v518 = vmax.f32 %v449, 0.0
  %v519 = vmax.f32 %v454, 0.0
  %v520 = vmax.f32 %v457, 0.0
  %v521 = vmax.f32 %v462, 0.0
  %v522 = vmax.f32 %v465, 0.0
  %v523 = vmax.f32 %v470, 0.0
  %v524 = vmax.f32 %v473, 0.0
  %v525 = vmax.f32 %v478, 0.0
  %v526 = vmax.f32 %v481, 0.0
  %v527 = vmax.f32 %v486, 0.0
  %v528 = vmax.f32 %v489, 0.0
  %v529 = vmax.f32 %v494, 0.0
  %v530 = vpack.c.bf16 %v500, %v499
  %v531 = vpack.c.bf16 %v502, %v501
  %v532 = vpack.c.bf16 %v504, %v503
  %v533 = vpack.c.bf16 %v506, %v505
  %v534 = vpack.c.bf16 %v508, %v507
  %v535 = vpack.c.bf16 %v510, %v509
  %v536 = vpack.c.bf16 %v512, %v511
  %v537 = vpack.c.bf16 %v514, %v513
  %v538 = vpack.c.bf16 %v516, %v515
  %v539 = vpack.c.bf16 %v518, %v517
  %v540 = vpack.c.bf16 %v520, %v519
  %v541 = vpack.c.bf16 %v522, %v521
  %v542 = vpack.c.bf16 %v524, %v523
  %v543 = vpack.c.bf16 %v526, %v525
  %v544 = vpack.c.bf16 %v528, %v527
  %v545 = vpack.c.bf16 %v529, %v529
  %v562 = vunpack.c.l.b16 %v530
  %v563 = vunpack.c.h.b16 %v530
  %v564 = vunpack.c.l.b16 %v531
  %v565 = vunpack.c.h.b16 %v531
  %v566 = vunpack.c.l.b16 %v532
  %v567 = vunpack.c.h.b16 %v532
  %v568 = vunpack.c.l.b16 %v533
  %v569 = vunpack.c.h.b16 %v533
  %v570 = vunpack.c.l.b16 %v534
  %v571 = vunpack.c.h.b16 %v534
  %v572 = vunpack.c.l.b16 %v535
  %v573 = vunpack.c.h.b16 %v535
  %v574 = vunpack.c.l.b16 %v536
  %v575 = vunpack.c.h.b16 %v536
  %v576 = vunpack.c.l.b16 %v537
  %v577 = vunpack.c.h.b16 %v537
  %v578 = vunpack.c.l.b16 %v538
  %v579 = vunpack.c.h.b16 %v538
  %v580 = vunpack.c.l.b16 %v539
  %v581 = vunpack.c.h.b16 %v539
  %v582 = vunpack.c.l.b16 %v540
  %v583 = vunpack.c.h.b16 %v540
  %v584 = vunpack.c.l.b16 %v541
  %v585 = vunpack.c.h.b16 %v541
  %v586 = vunpack.c.l.b16 %v542
  %v587 = vunpack.c.h.b16 %v542
  %v588 = vunpack.c.l.b16 %v543
  %v589 = vunpack.c.h.b16 %v543
  %v590 = vunpack.c.l.b16 %v544
  %v591 = vunpack.c.h.b16 %v544
  %v592 = vunpack.c.l.b16 %v545
  %v593 = vpack.c.b16 %v562, %v562
  %v594 = vpack.c.b16 %v563, %v563
  %v595 = vpack.c.b16 %v564, %v564
  %v596 = vpack.c.b16 %v565, %v565
  %v597 = vpack.c.b16 %v566, %v566
  %v598 = vpack.c.b16 %v567, %v567
  %v599 = vpack.c.b16 %v568, %v568
  %v600 = vpack.c.b16 %v569, %v569
  %v601 = vpack.c.b16 %v570, %v570
  %v602 = vpack.c.b16 %v571, %v571
  %v603 = vpack.c.b16 %v572, %v572
  %v604 = vpack.c.b16 %v573, %v573
  %v605 = vpack.c.b16 %v574, %v574
  %v606 = vpack.c.b16 %v575, %v575
  %v607 = vpack.c.b16 %v576, %v576
  %v608 = vpack.c.b16 %v577, %v577
  %v609 = vpack.c.b16 %v578, %v578
  %v610 = vpack.c.b16 %v579, %v579
  %v611 = vpack.c.b16 %v580, %v580
  %v612 = vpack.c.b16 %v581, %v581
  %v613 = vpack.c.b16 %v582, %v582
  %v614 = vpack.c.b16 %v583, %v583
  %v615 = vpack.c.b16 %v584, %v584
  %v616 = vpack.c.b16 %v585, %v585
  %v617 = vpack.c.b16 %v586, %v586
  %v618 = vpack.c.b16 %v587, %v587
  %v619 = vpack.c.b16 %v588, %v588
  %v620 = vpack.c.b16 %v589, %v589
  %v621 = vpack.c.b16 %v590, %v590
  %v622 = vpack.c.b16 %v591, %v591
  %v623 = vpack.c.b16 %v592, %v592
  %vm655 = vcmask 257024
  %656 = vst.msk [vmem:[%s3] sm:$0xf] %vm655, %v593
  %657 = vst.msk [vmem:[%s3 + $0x4] sm:$0xf] %vm655, %v594
  %658 = vst.msk [vmem:[%s3 + $0x8] sm:$0xf] %vm655, %v595
  %659 = vst.msk [vmem:[%s3 + $0xc] sm:$0xf] %vm655, %v596
  %660 = vst.msk [vmem:[%s3 + $0x10] sm:$0xf] %vm655, %v597
  %661 = vst.msk [vmem:[%s3 + $0x14] sm:$0xf] %vm655, %v598
  %662 = vst.msk [vmem:[%s3 + $0x18] sm:$0xf] %vm655, %v599
  %663 = vst.msk [vmem:[%s3 + $0x1c] sm:$0xf] %vm655, %v600
  %664 = vst.msk [vmem:[%s3 + $0x20] sm:$0xf] %vm655, %v601
  %665 = vst.msk [vmem:[%s3 + $0x24] sm:$0xf] %vm655, %v602
  %666 = vst.msk [vmem:[%s3 + $0x28] sm:$0xf] %vm655, %v603
  %667 = vst.msk [vmem:[%s3 + $0x2c] sm:$0xf] %vm655, %v604
  %668 = vst.msk [vmem:[%s3 + $0x30] sm:$0xf] %vm655, %v605
  %669 = vst.msk [vmem:[%s3 + $0x34] sm:$0xf] %vm655, %v606
  %670 = vst.msk [vmem:[%s3 + $0x38] sm:$0xf] %vm655, %v607
  %671 = vst.msk [vmem:[%s3 + $0x3c] sm:$0xf] %vm655, %v608
  %672 = vst.msk [vmem:[%s3 + $0x40] sm:$0xf] %vm655, %v609
  %673 = vst.msk [vmem:[%s3 + $0x44] sm:$0xf] %vm655, %v610
  %674 = vst.msk [vmem:[%s3 + $0x48] sm:$0xf] %vm655, %v611
  %675 = vst.msk [vmem:[%s3 + $0x4c] sm:$0xf] %vm655, %v612
  %676 = vst.msk [vmem:[%s3 + $0x50] sm:$0xf] %vm655, %v613
  %677 = vst.msk [vmem:[%s3 + $0x54] sm:$0xf] %vm655, %v614
  %678 = vst.msk [vmem:[%s3 + $0x58] sm:$0xf] %vm655, %v615
  %679 = vst.msk [vmem:[%s3 + $0x5c] sm:$0xf] %vm655, %v616
  %680 = vst.msk [vmem:[%s3 + $0x60] sm:$0xf] %vm655, %v617
  %681 = vst.msk [vmem:[%s3 + $0x64] sm:$0xf] %vm655, %v618
  %682 = vst.msk [vmem:[%s3 + $0x68] sm:$0xf] %vm655, %v619
  %683 = vst.msk [vmem:[%s3 + $0x6c] sm:$0xf] %vm655, %v620
  %684 = vst.msk [vmem:[%s3 + $0x70] sm:$0xf] %vm655, %v621
  %685 = vst.msk [vmem:[%s3 + $0x74] sm:$0xf] %vm655, %v622
  %vm686 = vcmask 253952
  %687 = vst.msk [vmem:[%s3 + $0x78] sm:$0x1] %vm686, %v623
  // Predicated region
  $region14: #{pointnav_baseline_forward.4} parent=0 // pred_check
    _
  $region15: #{pointnav_baseline_forward.4} parent=0 // pred_check_branch
    %689 = sbr.rel (0) target = $region17
  $region16: #{pointnav_baseline_forward.4} parent=0 // pred_region
    _
  $region17: #{pointnav_baseline_forward.4} parent=0 // pred_fallthru
    _
  // Predicated region
  $region18: #{pointnav_baseline_forward.4} parent=0 // pred_check
    _
  $region19: #{pointnav_baseline_forward.4} parent=0 // pred_check_branch
    %691 = sbr.rel (0) target = $region21
  $region20: #{pointnav_baseline_forward.4} parent=0 // pred_region
    _
  $region21: #{pointnav_baseline_forward.4} parent=0 // pred_fallthru
    _

// kernel: pointnav_baseline_forward.5
$region0: #{pointnav_baseline_forward.5}
  #allocation0 [shape = 'u32[]', space=smem, size = 0x4, offset = 0x4, fixed_abs, tag = 'smem constant byte address 0x4 - core index']
  #allocation1 [shape = 'u32[144,128]{1,0:T(1,128)}', space=vmem, size = 0x12000, scoped, tag = 'internal scratch']
  %s0 = inlined_call_operand.vmem [shape: bf16[32,512], index: 0, kind: input, shape index: {}]
  %s1 = inlined_call_operand.vmem [shape: bf16[512,64], index: 1, kind: input, shape index: {}]
  %s2 = inlined_call_operand.vmem [shape: f32[1,64], index: 2, kind: input, shape index: {}]
  %s3 = inlined_call_operand.vmem [shape: bf16[32,64], index: 3, kind: output, shape index: {}]
  %s4 = sld [smem:[#allocation0]]
  $region22: #{pointnav_baseline_forward.5} parent=0
    _
  %s6 = ssub.s32 1, %s4
  %s7 = scalar_select 0, %s6, %s4
  // Predicated region
  $region2: #{pointnav_baseline_forward.5} parent=0 // pred_check
    _
  $region3: #{pointnav_baseline_forward.5} parent=0 // pred_check_branch
    %9 = sbr.rel (0) target = $region5
  $region4: #{pointnav_baseline_forward.5} parent=0 // pred_region
    _
  $region5: #{pointnav_baseline_forward.5} parent=0 // pred_fallthru
    _
  // Predicated region
  $region6: #{pointnav_baseline_forward.5} parent=0 // pred_check
    _
  $region7: #{pointnav_baseline_forward.5} parent=0 // pred_check_branch
    %11 = sbr.rel (0) target = $region9
  $region8: #{pointnav_baseline_forward.5} parent=0 // pred_region
    _
  $region9: #{pointnav_baseline_forward.5} parent=0 // pred_fallthru
    _
  // Predicated region
  $region10: #{pointnav_baseline_forward.5} parent=0 // pred_check
    _
  $region11: #{pointnav_baseline_forward.5} parent=0 // pred_check_branch
    %13 = sbr.rel (0) target = $region13
  $region12: #{pointnav_baseline_forward.5} parent=0 // pred_region
    _
  $region13: #{pointnav_baseline_forward.5} parent=0 // pred_fallthru
    _
  %v15 = vld [vmem:[%s0] sm:$0xff]
  %v16 = vld [vmem:[%s0 + $0x8] sm:$0xff]
  %v17 = vld [vmem:[%s0 + $0x10] sm:$0xff]
  %v18 = vld [vmem:[%s0 + $0x18] sm:$0xff]
  %v19 = vld [vmem:[%s0 + $0x20] sm:$0xff]
  %v20 = vld [vmem:[%s0 + $0x28] sm:$0xff]
  %v21 = vld [vmem:[%s0 + $0x30] sm:$0xff]
  %v22 = vld [vmem:[%s0 + $0x38] sm:$0xff]
  %v23 = vld [vmem:[%s1] sm:$0xf]
  %v24 = vld [vmem:[%s1 + $0x4] sm:$0xf]
  %v25 = vld [vmem:[%s1 + $0x8] sm:$0xf]
  %v26 = vld [vmem:[%s1 + $0xc] sm:$0xf]
  %v27 = vld [vmem:[%s1 + $0x10] sm:$0xf]
  %v28 = vld [vmem:[%s1 + $0x14] sm:$0xf]
  %v29 = vld [vmem:[%s1 + $0x18] sm:$0xf]
  %v30 = vld [vmem:[%s1 + $0x1c] sm:$0xf]
  %v31 = vld [vmem:[%s1 + $0x20] sm:$0xf]
  %v32 = vld [vmem:[%s1 + $0x24] sm:$0xf]
  %v33 = vld [vmem:[%s1 + $0x28] sm:$0xf]
  %v34 = vld [vmem:[%s1 + $0x2c] sm:$0xf]
  %v35 = vld [vmem:[%s1 + $0x30] sm:$0xf]
  %v36 = vld [vmem:[%s1 + $0x34] sm:$0xf]
  %v37 = vld [vmem:[%s1 + $0x38] sm:$0xf]
  %v38 = vld [vmem:[%s1 + $0x3c] sm:$0xf]
  %v39 = vld [vmem:[%s1 + $0x40] sm:$0xf]
  %v40 = vld [vmem:[%s1 + $0x44] sm:$0xf]
  %v41 = vld [vmem:[%s1 + $0x48] sm:$0xf]
  %v42 = vld [vmem:[%s1 + $0x4c] sm:$0xf]
  %v43 = vld [vmem:[%s1 + $0x50] sm:$0xf]
  %v44 = vld [vmem:[%s1 + $0x54] sm:$0xf]
  %v45 = vld [vmem:[%s1 + $0x58] sm:$0xf]
  %v46 = vld [vmem:[%s1 + $0x5c] sm:$0xf]
  %v47 = vld [vmem:[%s1 + $0x60] sm:$0xf]
  %v48 = vld [vmem:[%s1 + $0x64] sm:$0xf]
  %v49 = vld [vmem:[%s1 + $0x68] sm:$0xf]
  %v50 = vld [vmem:[%s1 + $0x6c] sm:$0xf]
  %v51 = vld [vmem:[%s1 + $0x70] sm:$0xf]
  %v52 = vld [vmem:[%s1 + $0x74] sm:$0xf]
  %v53 = vld [vmem:[%s1 + $0x78] sm:$0xf]
  %v54 = vld [vmem:[%s1 + $0x7c] sm:$0xf]
  %v55 = vld [vmem:[%s1 + $0x80] sm:$0xf]
  %v56 = vld [vmem:[%s1 + $0x84] sm:$0xf]
  %v57 = vld [vmem:[%s1 + $0x88] sm:$0xf]
  %v58 = vld [vmem:[%s1 + $0x8c] sm:$0xf]
  %v59 = vld [vmem:[%s1 + $0x90] sm:$0xf]
  %v60 = vld [vmem:[%s1 + $0x94] sm:$0xf]
  %v61 = vld [vmem:[%s1 + $0x98] sm:$0xf]
  %v62 = vld [vmem:[%s1 + $0x9c] sm:$0xf]
  %v63 = vld [vmem:[%s1 + $0xa0] sm:$0xf]
  %v64 = vld [vmem:[%s1 + $0xa4] sm:$0xf]
  %v65 = vld [vmem:[%s1 + $0xa8] sm:$0xf]
  %v66 = vld [vmem:[%s1 + $0xac] sm:$0xf]
  %v67 = vld [vmem:[%s1 + $0xb0] sm:$0xf]
  %v68 = vld [vmem:[%s1 + $0xb4] sm:$0xf]
  %v69 = vld [vmem:[%s1 + $0xb8] sm:$0xf]
  %v70 = vld [vmem:[%s1 + $0xbc] sm:$0xf]
  %v71 = vld [vmem:[%s1 + $0xc0] sm:$0xf]
  %v72 = vld [vmem:[%s1 + $0xc4] sm:$0xf]
  %v73 = vld [vmem:[%s1 + $0xc8] sm:$0xf]
  %v74 = vld [vmem:[%s1 + $0xcc] sm:$0xf]
  %v75 = vld [vmem:[%s1 + $0xd0] sm:$0xf]
  %v76 = vld [vmem:[%s1 + $0xd4] sm:$0xf]
  %v77 = vld [vmem:[%s1 + $0xd8] sm:$0xf]
  %v78 = vld [vmem:[%s1 + $0xdc] sm:$0xf]
  %v79 = vld [vmem:[%s1 + $0xe0] sm:$0xf]
  %v80 = vld [vmem:[%s1 + $0xe4] sm:$0xf]
  %v81 = vld [vmem:[%s1 + $0xe8] sm:$0xf]
  %v82 = vld [vmem:[%s1 + $0xec] sm:$0xf]
  %v83 = vld [vmem:[%s1 + $0xf0] sm:$0xf]
  %v84 = vld [vmem:[%s1 + $0xf4] sm:$0xf]
  %v85 = vld [vmem:[%s1 + $0xf8] sm:$0xf]
  %v86 = vld [vmem:[%s1 + $0xfc] sm:$0xf]
  %v87 = vld [vmem:[%s2] sm:$0x1]
  %v89 = vlaneseq
  %v90 = vshrl.u32 %v89, 7
  %v91 = vsub.s32 0, %v90
  %v92 = vrot.slane %v87, %v91
  %v102 = vunpack.c.l.b16 %v15
  %v103 = vunpack.c.h.b16 %v15
  %v104 = vunpack.c.l.b16 %v16
  %v105 = vunpack.c.h.b16 %v16
  %v106 = vunpack.c.l.b16 %v17
  %v107 = vunpack.c.h.b16 %v17
  %v108 = vunpack.c.l.b16 %v18
  %v109 = vunpack.c.h.b16 %v18
  %v110 = vunpack.c.l.b16 %v19
  %v111 = vunpack.c.h.b16 %v19
  %v112 = vunpack.c.l.b16 %v20
  %v113 = vunpack.c.h.b16 %v20
  %v114 = vunpack.c.l.b16 %v21
  %v115 = vunpack.c.h.b16 %v21
  %v116 = vunpack.c.l.b16 %v22
  %v117 = vunpack.c.h.b16 %v22
  %v118 = vpack.c.b16 %v106, %v102
  %v119 = vpack.c.b16 %v107, %v103
  %v120 = vpack.c.b16 %v108, %v104
  %v121 = vpack.c.b16 %v109, %v105
  %v122 = vpack.c.b16 %v114, %v110
  %v123 = vpack.c.b16 %v115, %v111
  %v124 = vpack.c.b16 %v116, %v112
  %v125 = vpack.c.b16 %v117, %v113
  %v198 = vunpack.c.l.b16 %v23
  %v199 = vunpack.c.l.b16 %v24
  %v200 = vunpack.c.l.b16 %v25
  %v201 = vunpack.c.l.b16 %v26
  %v202 = vunpack.c.l.b16 %v27
  %v203 = vunpack.c.l.b16 %v28
  %v204 = vunpack.c.l.b16 %v29
  %v205 = vunpack.c.l.b16 %v30
  %v206 = vunpack.c.l.b16 %v31
  %v207 = vunpack.c.l.b16 %v32
  %v208 = vunpack.c.l.b16 %v33
  %v209 = vunpack.c.l.b16 %v34
  %v210 = vunpack.c.l.b16 %v35
  %v211 = vunpack.c.l.b16 %v36
  %v212 = vunpack.c.l.b16 %v37
  %v213 = vunpack.c.l.b16 %v38
  %v214 = vunpack.c.l.b16 %v39
  %v215 = vunpack.c.l.b16 %v40
  %v216 = vunpack.c.l.b16 %v41
  %v217 = vunpack.c.l.b16 %v42
  %v218 = vunpack.c.l.b16 %v43
  %v219 = vunpack.c.l.b16 %v44
  %v220 = vunpack.c.l.b16 %v45
  %v221 = vunpack.c.l.b16 %v46
  %v222 = vunpack.c.l.b16 %v47
  %v223 = vunpack.c.l.b16 %v48
  %v224 = vunpack.c.l.b16 %v49
  %v225 = vunpack.c.l.b16 %v50
  %v226 = vunpack.c.l.b16 %v51
  %v227 = vunpack.c.l.b16 %v52
  %v228 = vunpack.c.l.b16 %v53
  %v229 = vunpack.c.l.b16 %v54
  %v230 = vunpack.c.l.b16 %v55
  %v231 = vunpack.c.l.b16 %v56
  %v232 = vunpack.c.l.b16 %v57
  %v233 = vunpack.c.l.b16 %v58
  %v234 = vunpack.c.l.b16 %v59
  %v235 = vunpack.c.l.b16 %v60
  %v236 = vunpack.c.l.b16 %v61
  %v237 = vunpack.c.l.b16 %v62
  %v238 = vunpack.c.l.b16 %v63
  %v239 = vunpack.c.l.b16 %v64
  %v240 = vunpack.c.l.b16 %v65
  %v241 = vunpack.c.l.b16 %v66
  %v242 = vunpack.c.l.b16 %v67
  %v243 = vunpack.c.l.b16 %v68
  %v244 = vunpack.c.l.b16 %v69
  %v245 = vunpack.c.l.b16 %v70
  %v246 = vunpack.c.l.b16 %v71
  %v247 = vunpack.c.l.b16 %v72
  %v248 = vunpack.c.l.b16 %v73
  %v249 = vunpack.c.l.b16 %v74
  %v250 = vunpack.c.l.b16 %v75
  %v251 = vunpack.c.l.b16 %v76
  %v252 = vunpack.c.l.b16 %v77
  %v253 = vunpack.c.l.b16 %v78
  %v254 = vunpack.c.l.b16 %v79
  %v255 = vunpack.c.l.b16 %v80
  %v256 = vunpack.c.l.b16 %v81
  %v257 = vunpack.c.l.b16 %v82
  %v258 = vunpack.c.l.b16 %v83
  %v259 = vunpack.c.l.b16 %v84
  %v260 = vunpack.c.l.b16 %v85
  %v261 = vunpack.c.l.b16 %v86
  %v262 = vpack.c.b16 %v199, %v198
  %v263 = vpack.c.b16 %v201, %v200
  %v264 = vpack.c.b16 %v203, %v202
  %v265 = vpack.c.b16 %v205, %v204
  %v266 = vpack.c.b16 %v207, %v206
  %v267 = vpack.c.b16 %v209, %v208
  %v268 = vpack.c.b16 %v211, %v210
  %v269 = vpack.c.b16 %v213, %v212
  %v270 = vpack.c.b16 %v215, %v214
  %v271 = vpack.c.b16 %v217, %v216
  %v272 = vpack.c.b16 %v219, %v218
  %v273 = vpack.c.b16 %v221, %v220
  %v274 = vpack.c.b16 %v223, %v222
  %v275 = vpack.c.b16 %v225, %v224
  %v276 = vpack.c.b16 %v227, %v226
  %v277 = vpack.c.b16 %v229, %v228
  %v278 = vpack.c.b16 %v231, %v230
  %v279 = vpack.c.b16 %v233, %v232
  %v280 = vpack.c.b16 %v235, %v234
  %v281 = vpack.c.b16 %v237, %v236
  %v282 = vpack.c.b16 %v239, %v238
  %v283 = vpack.c.b16 %v241, %v240
  %v284 = vpack.c.b16 %v243, %v242
  %v285 = vpack.c.b16 %v245, %v244
  %v286 = vpack.c.b16 %v247, %v246
  %v287 = vpack.c.b16 %v249, %v248
  %v288 = vpack.c.b16 %v251, %v250
  %v289 = vpack.c.b16 %v253, %v252
  %v290 = vpack.c.b16 %v255, %v254
  %v291 = vpack.c.b16 %v257, %v256
  %v292 = vpack.c.b16 %v259, %v258
  %v293 = vpack.c.b16 %v261, %v260
  %326 = vmatprep.subr.bf16.mxu0 0
  %327 = vmatpush1.bf16.msra.mxu0 %v269
  %328 = vmatprep.subr.bf16.mxu0 0
  %329 = vmatpush1.bf16.msra.mxu0 %v268
  %330 = vmatprep.subr.bf16.mxu0 0
  %331 = vmatpush1.bf16.msra.mxu0 %v267
  %332 = vmatprep.subr.bf16.mxu0 0
  %333 = vmatpush1.bf16.msra.mxu0 %v266
  %334 = vmatprep.subr.bf16.mxu0 0
  %335 = vmatpush1.bf16.msra.mxu0 %v265
  %336 = vmatprep.subr.bf16.mxu0 0
  %337 = vmatpush1.bf16.msra.mxu0 %v264
  %338 = vmatprep.subr.bf16.mxu0 0
  %339 = vmatpush1.bf16.msra.mxu0 %v263
  %340 = vmatprep.subr.bf16.mxu0 0
  %341 = vmatpush1.bf16.msra.mxu0 %v262
  %342 = vmatprep.subr.bf16.mxu0 0
  %343 = vmatpush2.bf16.msra.mxu0 %v277
  %344 = vmatprep.subr.bf16.mxu0 0
  %345 = vmatpush2.bf16.msra.mxu0 %v276
  %346 = vmatprep.subr.bf16.mxu0 0
  %347 = vmatpush2.bf16.msra.mxu0 %v275
  %348 = vmatprep.subr.bf16.mxu0 0
  %349 = vmatpush2.bf16.msra.mxu0 %v274
  %350 = vmatprep.subr.bf16.mxu0 0
  %351 = vmatpush2.bf16.msra.mxu0 %v273
  %352 = vmatprep.subr.bf16.mxu0 0
  %353 = vmatpush2.bf16.msra.mxu0 %v272
  %354 = vmatprep.subr.bf16.mxu0 0
  %355 = vmatpush2.bf16.msra.mxu0 %v271
  %356 = vmatprep.subr.bf16.mxu0 0
  %357 = vmatpush2.bf16.msra.mxu0 %v270
  %358 = vmatprep.mubr.bf16.mxu0 %v119
  %359 = vmatmul.mubr.bf16.gmra.mxu0 %v118
  %v360 = vpop.f32.mrf.mxu0
  %v361 = vadd.f32 %v92, %v360
  %v362 = vpop.f32.mrf.mxu0
  %v363 = vpop.f32.mrf.mxu0
  %v364 = vadd.f32 %v92, %v363
  %v365 = vpop.f32.mrf.mxu0
  %366 = vmatprep.mubr.bf16.mxu0 %v123
  %367 = vmatmul.mubr.bf16.gmra.mxu0 %v122
  %v368 = vpop.f32.mrf.mxu0
  %v369 = vadd.f32 %v92, %v368
  %v370 = vpop.f32.mrf.mxu0
  %v371 = vpop.f32.mrf.mxu0
  %v372 = vadd.f32 %v92, %v371
  %v373 = vpop.f32.mrf.mxu0
  %374 = vdwg.mxu0
  %375 = vmatprep.subr.bf16.mxu0 0
  %376 = vmatpush1.bf16.msra.mxu0 %v285
  %377 = vmatprep.subr.bf16.mxu0 0
  %378 = vmatpush1.bf16.msra.mxu0 %v284
  %379 = vmatprep.subr.bf16.mxu0 0
  %380 = vmatpush1.bf16.msra.mxu0 %v283
  %381 = vmatprep.subr.bf16.mxu0 0
  %382 = vmatpush1.bf16.msra.mxu0 %v282
  %383 = vmatprep.subr.bf16.mxu0 0
  %384 = vmatpush1.bf16.msra.mxu0 %v281
  %385 = vmatprep.subr.bf16.mxu0 0
  %386 = vmatpush1.bf16.msra.mxu0 %v280
  %387 = vmatprep.subr.bf16.mxu0 0
  %388 = vmatpush1.bf16.msra.mxu0 %v279
  %389 = vmatprep.subr.bf16.mxu0 0
  %390 = vmatpush1.bf16.msra.mxu0 %v278
  %391 = vmatprep.subr.bf16.mxu0 0
  %392 = vmatpush2.bf16.msra.mxu0 %v293
  %393 = vmatprep.subr.bf16.mxu0 0
  %394 = vmatpush2.bf16.msra.mxu0 %v292
  %395 = vmatprep.subr.bf16.mxu0 0
  %396 = vmatpush2.bf16.msra.mxu0 %v291
  %397 = vmatprep.subr.bf16.mxu0 0
  %398 = vmatpush2.bf16.msra.mxu0 %v290
  %399 = vmatprep.subr.bf16.mxu0 0
  %400 = vmatpush2.bf16.msra.mxu0 %v289
  %401 = vmatprep.subr.bf16.mxu0 0
  %402 = vmatpush2.bf16.msra.mxu0 %v288
  %403 = vmatprep.subr.bf16.mxu0 0
  %404 = vmatpush2.bf16.msra.mxu0 %v287
  %405 = vmatprep.subr.bf16.mxu0 0
  %406 = vmatpush2.bf16.msra.mxu0 %v286
  %407 = vmatprep.mubr.bf16.mxu0 %v121
  %408 = vmatmul.mubr.bf16.gmra.mxu0 %v120
  %v409 = vpop.f32.mrf.mxu0
  %v410 = vadd.f32 %v361, %v409
  %v411 = vpop.f32.mrf.mxu0
  %v412 = vpop.f32.mrf.mxu0
  %v413 = vadd.f32 %v364, %v412
  %v414 = vpop.f32.mrf.mxu0
  %415 = vmatprep.mubr.bf16.mxu0 %v125
  %416 = vmatmul.mubr.bf16.gmra.mxu0 %v124
  %v417 = vpop.f32.mrf.mxu0
  %v418 = vadd.f32 %v369, %v417
  %v419 = vpop.f32.mrf.mxu0
  %v420 = vpop.f32.mrf.mxu0
  %v421 = vadd.f32 %v372, %v420
  %v422 = vpop.f32.mrf.mxu0
  %423 = vdwg.mxu0
  %v424 = vmax.f32 %v410, 0.0
  %v425 = vmax.f32 %v413, 0.0
  %v426 = vmax.f32 %v418, 0.0
  %v427 = vmax.f32 %v421, 0.0
  %v428 = vpack.c.bf16 %v425, %v424
  %v429 = vpack.c.bf16 %v427, %v426
  %v432 = vunpack.c.l.b16 %v428
  %v433 = vunpack.c.h.b16 %v428
  %v434 = vunpack.c.l.b16 %v429
  %v435 = vunpack.c.h.b16 %v429
  %v436 = vpack.c.b16 %v432, %v432
  %v437 = vpack.c.b16 %v433, %v433
  %v438 = vpack.c.b16 %v434, %v434
  %v439 = vpack.c.b16 %v435, %v435
  %vm444 = vcmask 519168
  %445 = vst.msk [vmem:[%s3] sm:$0xf] %vm444, %v436
  %446 = vst.msk [vmem:[%s3 + $0x4] sm:$0xf] %vm444, %v437
  %447 = vst.msk [vmem:[%s3 + $0x8] sm:$0xf] %vm444, %v438
  %448 = vst.msk [vmem:[%s3 + $0xc] sm:$0xf] %vm444, %v439
  // Predicated region
  $region14: #{pointnav_baseline_forward.5} parent=0 // pred_check
    _
  $region15: #{pointnav_baseline_forward.5} parent=0 // pred_check_branch
    %450 = sbr.rel (0) target = $region17
  $region16: #{pointnav_baseline_forward.5} parent=0 // pred_region
    _
  $region17: #{pointnav_baseline_forward.5} parent=0 // pred_fallthru
    _
  // Predicated region
  $region18: #{pointnav_baseline_forward.5} parent=0 // pred_check
    _
  $region19: #{pointnav_baseline_forward.5} parent=0 // pred_check_branch
    %452 = sbr.rel (0) target = $region21
  $region20: #{pointnav_baseline_forward.5} parent=0 // pred_region
    _
  $region21: #{pointnav_baseline_forward.5} parent=0 // pred_fallthru
    _

// kernel: pointnav_baseline_forward.7
$region0: #{pointnav_baseline_forward.7}
  #allocation0 [shape = 'u32[]', space=smem, size = 0x4, offset = 0x4, fixed_abs, tag = 'smem constant byte address 0x4 - core index']
  #allocation1 [shape = 'u32[144,128]{1,0:T(1,128)}', space=vmem, size = 0x12000, scoped, tag = 'internal scratch']
  %s0 = inlined_call_operand.vmem [shape: bf16[2,128], index: 0, kind: input, shape index: {}]
  %s1 = inlined_call_operand.vmem [shape: bf16[2,2], index: 1, kind: input, shape index: {}]
  %s2 = inlined_call_operand.vmem [shape: f32[2,32], index: 2, kind: input, shape index: {}, may-alias: {2,11}]
  %s3 = inlined_call_operand.vmem [shape: f32[2,1], index: 3, kind: input, shape index: {}]
  %s4 = inlined_call_operand.vmem [shape: bf16[128,32], index: 4, kind: input, shape index: {}]
  %s5 = inlined_call_operand.vmem [shape: f32[1,32], index: 5, kind: input, shape index: {}]
  %s6 = inlined_call_operand.vmem [shape: bf16[32,96], index: 6, kind: input, shape index: {}]
  %s7 = inlined_call_operand.vmem [shape: bf16[2,96], index: 7, kind: input, shape index: {}]
  %s8 = inlined_call_operand.vmem [shape: bf16[32,96], index: 8, kind: input, shape index: {}]
  %s9 = inlined_call_operand.vmem [shape: f32[1,96], index: 9, kind: input, shape index: {}]
  %s10 = inlined_call_operand.vmem [shape: f32[1,96], index: 10, kind: input, shape index: {}]
  %s11 = inlined_call_operand.vmem [shape: f32[2,32], index: 11, kind: output, shape index: {}, may-alias: {2,11}]
  %s12 = sld [smem:[#allocation0]]
  $region54: #{pointnav_baseline_forward.7} parent=0
    _
  %s14 = ssub.s32 1, %s12
  %s15 = scalar_select 0, %s14, %s12
  // Predicated region
  $region2: #{pointnav_baseline_forward.7} parent=0 // pred_check
    _
  $region3: #{pointnav_baseline_forward.7} parent=0 // pred_check_branch
    %17 = sbr.rel (0) target = $region5
  $region4: #{pointnav_baseline_forward.7} parent=0 // pred_region
    _
  $region5: #{pointnav_baseline_forward.7} parent=0 // pred_fallthru
    _
  // Predicated region
  $region6: #{pointnav_baseline_forward.7} parent=0 // pred_check
    _
  $region7: #{pointnav_baseline_forward.7} parent=0 // pred_check_branch
    %19 = sbr.rel (0) target = $region9
  $region8: #{pointnav_baseline_forward.7} parent=0 // pred_region
    _
  $region9: #{pointnav_baseline_forward.7} parent=0 // pred_fallthru
    _
  // Predicated region
  $region10: #{pointnav_baseline_forward.7} parent=0 // pred_check
    _
  $region11: #{pointnav_baseline_forward.7} parent=0 // pred_check_branch
    %21 = sbr.rel (0) target = $region13
  $region12: #{pointnav_baseline_forward.7} parent=0 // pred_region
    _
  $region13: #{pointnav_baseline_forward.7} parent=0 // pred_fallthru
    _
  // Predicated region
  $region14: #{pointnav_baseline_forward.7} parent=0 // pred_check
    _
  $region15: #{pointnav_baseline_forward.7} parent=0 // pred_check_branch
    %23 = sbr.rel (0) target = $region17
  $region16: #{pointnav_baseline_forward.7} parent=0 // pred_region
    _
  $region17: #{pointnav_baseline_forward.7} parent=0 // pred_fallthru
    _
  // Predicated region
  $region18: #{pointnav_baseline_forward.7} parent=0 // pred_check
    _
  $region19: #{pointnav_baseline_forward.7} parent=0 // pred_check_branch
    %25 = sbr.rel (0) target = $region21
  $region20: #{pointnav_baseline_forward.7} parent=0 // pred_region
    _
  $region21: #{pointnav_baseline_forward.7} parent=0 // pred_fallthru
    _
  // Predicated region
  $region22: #{pointnav_baseline_forward.7} parent=0 // pred_check
    _
  $region23: #{pointnav_baseline_forward.7} parent=0 // pred_check_branch
    %27 = sbr.rel (0) target = $region25
  $region24: #{pointnav_baseline_forward.7} parent=0 // pred_region
    _
  $region25: #{pointnav_baseline_forward.7} parent=0 // pred_fallthru
    _
  // Predicated region
  $region26: #{pointnav_baseline_forward.7} parent=0 // pred_check
    _
  $region27: #{pointnav_baseline_forward.7} parent=0 // pred_check_branch
    %29 = sbr.rel (0) target = $region29
  $region28: #{pointnav_baseline_forward.7} parent=0 // pred_region
    _
  $region29: #{pointnav_baseline_forward.7} parent=0 // pred_fallthru
    _
  // Predicated region
  $region30: #{pointnav_baseline_forward.7} parent=0 // pred_check
    _
  $region31: #{pointnav_baseline_forward.7} parent=0 // pred_check_branch
    %31 = sbr.rel (0) target = $region33
  $region32: #{pointnav_baseline_forward.7} parent=0 // pred_region
    _
  $region33: #{pointnav_baseline_forward.7} parent=0 // pred_fallthru
    _
  // Predicated region
  $region34: #{pointnav_baseline_forward.7} parent=0 // pred_check
    _
  $region35: #{pointnav_baseline_forward.7} parent=0 // pred_check_branch
    %33 = sbr.rel (0) target = $region37
  $region36: #{pointnav_baseline_forward.7} parent=0 // pred_region
    _
  $region37: #{pointnav_baseline_forward.7} parent=0 // pred_fallthru
    _
  // Predicated region
  $region38: #{pointnav_baseline_forward.7} parent=0 // pred_check
    _
  $region39: #{pointnav_baseline_forward.7} parent=0 // pred_check_branch
    %35 = sbr.rel (0) target = $region41
  $region40: #{pointnav_baseline_forward.7} parent=0 // pred_region
    _
  $region41: #{pointnav_baseline_forward.7} parent=0 // pred_fallthru
    _
  // Predicated region
  $region42: #{pointnav_baseline_forward.7} parent=0 // pred_check
    _
  $region43: #{pointnav_baseline_forward.7} parent=0 // pred_check_branch
    %37 = sbr.rel (0) target = $region45
  $region44: #{pointnav_baseline_forward.7} parent=0 // pred_region
    _
  $region45: #{pointnav_baseline_forward.7} parent=0 // pred_fallthru
    _
  %v39 = vld [vmem:[%s0] sm:$0x1]
  %v40 = vld [vmem:[%s4] sm:$0xf]
  %v41 = vld [vmem:[%s4 + $0x4] sm:$0xf]
  %v42 = vld [vmem:[%s4 + $0x8] sm:$0xf]
  %v43 = vld [vmem:[%s4 + $0xc] sm:$0xf]
  %v44 = vld [vmem:[%s4 + $0x10] sm:$0xf]
  %v45 = vld [vmem:[%s4 + $0x14] sm:$0xf]
  %v46 = vld [vmem:[%s4 + $0x18] sm:$0xf]
  %v47 = vld [vmem:[%s4 + $0x1c] sm:$0xf]
  %v48 = vld [vmem:[%s4 + $0x20] sm:$0xf]
  %v49 = vld [vmem:[%s4 + $0x24] sm:$0xf]
  %v50 = vld [vmem:[%s4 + $0x28] sm:$0xf]
  %v51 = vld [vmem:[%s4 + $0x2c] sm:$0xf]
  %v52 = vld [vmem:[%s4 + $0x30] sm:$0xf]
  %v53 = vld [vmem:[%s4 + $0x34] sm:$0xf]
  %v54 = vld [vmem:[%s4 + $0x38] sm:$0xf]
  %v55 = vld [vmem:[%s4 + $0x3c] sm:$0xf]
  %v56 = vld [vmem:[%s5] sm:$0x1]
  %v58 = vlaneseq
  %v59 = vshrl.u32 %v58, 7
  %v60 = vsub.s32 0, %v59
  %v61 = vrot.slane %v56, %v60
  %v79 = vunpack.c.l.b16 %v40
  %v80 = vunpack.c.l.b16 %v41
  %v81 = vunpack.c.l.b16 %v42
  %v82 = vunpack.c.l.b16 %v43
  %v83 = vunpack.c.l.b16 %v44
  %v84 = vunpack.c.l.b16 %v45
  %v85 = vunpack.c.l.b16 %v46
  %v86 = vunpack.c.l.b16 %v47
  %v87 = vunpack.c.l.b16 %v48
  %v88 = vunpack.c.l.b16 %v49
  %v89 = vunpack.c.l.b16 %v50
  %v90 = vunpack.c.l.b16 %v51
  %v91 = vunpack.c.l.b16 %v52
  %v92 = vunpack.c.l.b16 %v53
  %v93 = vunpack.c.l.b16 %v54
  %v94 = vunpack.c.l.b16 %v55
  %v95 = vpack.c.b16 %v80, %v79
  %v96 = vpack.c.b16 %v82, %v81
  %v97 = vpack.c.b16 %v84, %v83
  %v98 = vpack.c.b16 %v86, %v85
  %v99 = vpack.c.b16 %v88, %v87
  %v100 = vpack.c.b16 %v90, %v89
  %v101 = vpack.c.b16 %v92, %v91
  %v102 = vpack.c.b16 %v94, %v93
  %111 = vmatprep.subr.bf16.mxu0 0
  %112 = vmatpush1.bf16.msra.mxu0 %v102
  %113 = vmatprep.subr.bf16.mxu0 0
  %114 = vmatpush1.bf16.msra.mxu0 %v101
  %115 = vmatprep.subr.bf16.mxu0 0
  %116 = vmatpush1.bf16.msra.mxu0 %v100
  %117 = vmatprep.subr.bf16.mxu0 0
  %118 = vmatpush1.bf16.msra.mxu0 %v99
  %119 = vmatprep.subr.bf16.mxu0 0
  %120 = vmatpush1.bf16.msra.mxu0 %v98
  %121 = vmatprep.subr.bf16.mxu0 0
  %122 = vmatpush1.bf16.msra.mxu0 %v97
  %123 = vmatprep.subr.bf16.mxu0 0
  %124 = vmatpush1.bf16.msra.mxu0 %v96
  %125 = vmatprep.subr.bf16.mxu0 0
  %126 = vmatpush1.bf16.msra.mxu0 %v95
  %127 = vmatprep.subr.bf16.mxu0 0
  %128 = vmatpush2.bf16.msra.mxu0 0
  %129 = vmatprep.subr.bf16.mxu0 0
  %130 = vmatpush2.bf16.msra.mxu0 0
  %131 = vmatprep.subr.bf16.mxu0 0
  %132 = vmatpush2.bf16.msra.mxu0 0
  %133 = vmatprep.subr.bf16.mxu0 0
  %134 = vmatpush2.bf16.msra.mxu0 0
  %135 = vmatprep.subr.bf16.mxu0 0
  %136 = vmatpush2.bf16.msra.mxu0 0
  %137 = vmatprep.subr.bf16.mxu0 0
  %138 = vmatpush2.bf16.msra.mxu0 0
  %139 = vmatprep.subr.bf16.mxu0 0
  %140 = vmatpush2.bf16.msra.mxu0 0
  %141 = vmatprep.subr.bf16.mxu0 0
  %142 = vmatpush2.bf16.msra.mxu0 0
  %143 = vmatprep.mubr.bf16.mxu0 0
  %144 = vmatmul.mubr.bf16.gmra.mxu0 %v39
  %v145 = vpop.f32.mrf.mxu0
  %v146 = vadd.f32 %v61, %v145
  %v147 = vpop.f32.mrf.mxu0
  %v148 = vpop.f32.mrf.mxu0
  %v149 = vpop.f32.mrf.mxu0
  %150 = vdwg.mxu0
  %v151 = vmax.f32 %v146, 0.0
  %v152 = vld [vmem:[%s2] sm:$0x3]
  %v153 = vld [vmem:[%s3] sm:$0x3]
  %155 = vset.pattern.permute.xlu0 0
  %156 = vperm.xlu0 %155, %v153
  %v157 = vpop.permute.xlu0 %156
  %v159 = vmul.f32 %v152, %v157
  %v160 = vpack.c.bf16 %v151, %v151
  %v161 = vld [vmem:[%s6] sm:$0xf]
  %v162 = vld [vmem:[%s6 + $0x4] sm:$0xf]
  %v163 = vld [vmem:[%s6 + $0x8] sm:$0xf]
  %v164 = vld [vmem:[%s6 + $0xc] sm:$0xf]
  %v165 = vld [vmem:[%s1] sm:$0x1]
  %v166 = vld [vmem:[%s7] sm:$0x1]
  %vm167 = vcmask 15360
  %v169 = vsel %vm167, %v165, 0
  %vm171 = vcmask 1040384
  %v173 = vsel %vm171, %v166, 0
  %175 = vmatprep.subr.bf16.mxu0 0
  %176 = vmatpush1.bf16.msra.mxu0 0
  %177 = vmatprep.subr.bf16.mxu0 0
  %178 = vmatpush1.bf16.msra.mxu0 0
  %179 = vmatprep.subr.bf16.mxu0 0
  %180 = vmatpush1.bf16.msra.mxu0 0
  %181 = vmatprep.subr.bf16.mxu0 0
  %182 = vmatpush1.bf16.msra.mxu0 0
  %183 = vmatprep.subr.bf16.mxu0 0
  %184 = vmatpush1.bf16.msra.mxu0 0
  %185 = vmatprep.subr.bf16.mxu0 0
  %186 = vmatpush1.bf16.msra.mxu0 0
  %187 = vmatprep.subr.bf16.mxu0 0
  %188 = vmatpush1.bf16.msra.mxu0 0
  %189 = vmatprep.subr.bf16.mxu0 0
  %190 = vmatpush1.bf16.msra.mxu0 %v173
  %191 = vmatprep.subr.bf16.mxu0 0
  %192 = vmatpush2.bf16.msra.mxu0 0
  %193 = vmatprep.subr.bf16.mxu0 0
  %194 = vmatpush2.bf16.msra.mxu0 0
  %195 = vmatprep.subr.bf16.mxu0 0
  %196 = vmatpush2.bf16.msra.mxu0 0
  %197 = vmatprep.subr.bf16.mxu0 0
  %198 = vmatpush2.bf16.msra.mxu0 0
  %199 = vmatprep.subr.bf16.mxu0 0
  %200 = vmatpush2.bf16.msra.mxu0 0
  %201 = vmatprep.subr.bf16.mxu0 0
  %202 = vmatpush2.bf16.msra.mxu0 0
  %203 = vmatprep.subr.bf16.mxu0 0
  %204 = vmatpush2.bf16.msra.mxu0 0
  %205 = vmatprep.subr.bf16.mxu0 0
  %206 = vmatpush2.bf16.msra.mxu0 0
  %207 = vmatprep.mubr.bf16.mxu0 0
  %208 = vmatmul.mubr.bf16.gmra.mxu0 %v169
  %v209 = vpop.f32.mrf.mxu0
  %v210 = vadd.f32 0.0, %v209
  %v211 = vpop.f32.mrf.mxu0
  %v212 = vpop.f32.mrf.mxu0
  %v213 = vpop.f32.mrf.mxu0
  %214 = vdwg.mxu0
  %v219 = vunpack.c.l.b16 %v161
  %v220 = vunpack.c.l.b16 %v162
  %v221 = vunpack.c.l.b16 %v163
  %v222 = vunpack.c.l.b16 %v164
  %v223 = vpack.c.b16 %v220, %v219
  %v224 = vpack.c.b16 %v222, %v221
  %vm227 = vcmask 261120
  %v229 = vsel %vm227, %v160, 0
  %231 = vmatprep.subr.bf16.mxu0 0
  %232 = vmatpush1.bf16.msra.mxu0 0
  %233 = vmatprep.subr.bf16.mxu0 0
  %234 = vmatpush1.bf16.msra.mxu0 0
  %235 = vmatprep.subr.bf16.mxu0 0
  %236 = vmatpush1.bf16.msra.mxu0 0
  %237 = vmatprep.subr.bf16.mxu0 0
  %238 = vmatpush1.bf16.msra.mxu0 0
  %239 = vmatprep.subr.bf16.mxu0 0
  %240 = vmatpush1.bf16.msra.mxu0 0
  %241 = vmatprep.subr.bf16.mxu0 0
  %242 = vmatpush1.bf16.msra.mxu0 0
  %243 = vmatprep.subr.bf16.mxu0 0
  %244 = vmatpush1.bf16.msra.mxu0 %v224
  %245 = vmatprep.subr.bf16.mxu0 0
  %246 = vmatpush1.bf16.msra.mxu0 %v223
  %247 = vmatprep.subr.bf16.mxu0 0
  %248 = vmatpush2.bf16.msra.mxu0 0
  %249 = vmatprep.subr.bf16.mxu0 0
  %250 = vmatpush2.bf16.msra.mxu0 0
  %251 = vmatprep.subr.bf16.mxu0 0
  %252 = vmatpush2.bf16.msra.mxu0 0
  %253 = vmatprep.subr.bf16.mxu0 0
  %254 = vmatpush2.bf16.msra.mxu0 0
  %255 = vmatprep.subr.bf16.mxu0 0
  %256 = vmatpush2.bf16.msra.mxu0 0
  %257 = vmatprep.subr.bf16.mxu0 0
  %258 = vmatpush2.bf16.msra.mxu0 0
  %259 = vmatprep.subr.bf16.mxu0 0
  %260 = vmatpush2.bf16.msra.mxu0 0
  %261 = vmatprep.subr.bf16.mxu0 0
  %262 = vmatpush2.bf16.msra.mxu0 0
  %263 = vmatprep.mubr.bf16.mxu0 0
  %264 = vmatmul.mubr.bf16.gmra.mxu0 %v229
  %v265 = vpop.f32.mrf.mxu0
  %v266 = vadd.f32 %v210, %v265
  %v267 = vpop.f32.mrf.mxu0
  %v268 = vpop.f32.mrf.mxu0
  %v269 = vpop.f32.mrf.mxu0
  %270 = vdwg.mxu0
  %v271 = vld [vmem:[%s9] sm:$0x1]
  %v273 = vlaneseq
  %v274 = vshrl.u32 %v273, 7
  %v275 = vsub.s32 0, %v274
  %v276 = vrot.slane %v271, %v275
  %v278 = vadd.f32 %v266, %v276
  %v279 = vpack.c.bf16 %v159, %v159
  %v280 = vld [vmem:[%s8] sm:$0xf]
  %v281 = vld [vmem:[%s8 + $0x4] sm:$0xf]
  %v282 = vld [vmem:[%s8 + $0x8] sm:$0xf]
  %v283 = vld [vmem:[%s8 + $0xc] sm:$0xf]
  %v284 = vld [vmem:[%s10] sm:$0x1]
  %v286 = vlaneseq
  %v287 = vshrl.u32 %v286, 7
  %v288 = vsub.s32 0, %v287
  %v289 = vrot.slane %v284, %v288
  %v295 = vunpack.c.l.b16 %v280
  %v296 = vunpack.c.l.b16 %v281
  %v297 = vunpack.c.l.b16 %v282
  %v298 = vunpack.c.l.b16 %v283
  %v299 = vpack.c.b16 %v296, %v295
  %v300 = vpack.c.b16 %v298, %v297
  %v304 = vsel %vm227, %v279, 0
  %306 = vmatprep.subr.bf16.mxu0 0
  %307 = vmatpush1.bf16.msra.mxu0 0
  %308 = vmatprep.subr.bf16.mxu0 0
  %309 = vmatpush1.bf16.msra.mxu0 0
  %310 = vmatprep.subr.bf16.mxu0 0
  %311 = vmatpush1.bf16.msra.mxu0 0
  %312 = vmatprep.subr.bf16.mxu0 0
  %313 = vmatpush1.bf16.msra.mxu0 0
  %314 = vmatprep.subr.bf16.mxu0 0
  %315 = vmatpush1.bf16.msra.mxu0 0
  %316 = vmatprep.subr.bf16.mxu0 0
  %317 = vmatpush1.bf16.msra.mxu0 0
  %318 = vmatprep.subr.bf16.mxu0 0
  %319 = vmatpush1.bf16.msra.mxu0 %v300
  %320 = vmatprep.subr.bf16.mxu0 0
  %321 = vmatpush1.bf16.msra.mxu0 %v299
  %322 = vmatprep.subr.bf16.mxu0 0
  %323 = vmatpush2.bf16.msra.mxu0 0
  %324 = vmatprep.subr.bf16.mxu0 0
  %325 = vmatpush2.bf16.msra.mxu0 0
  %326 = vmatprep.subr.bf16.mxu0 0
  %327 = vmatpush2.bf16.msra.mxu0 0
  %328 = vmatprep.subr.bf16.mxu0 0
  %329 = vmatpush2.bf16.msra.mxu0 0
  %330 = vmatprep.subr.bf16.mxu0 0
  %331 = vmatpush2.bf16.msra.mxu0 0
  %332 = vmatprep.subr.bf16.mxu0 0
  %333 = vmatpush2.bf16.msra.mxu0 0
  %334 = vmatprep.subr.bf16.mxu0 0
  %335 = vmatpush2.bf16.msra.mxu0 0
  %336 = vmatprep.subr.bf16.mxu0 0
  %337 = vmatpush2.bf16.msra.mxu0 0
  %338 = vmatprep.mubr.bf16.mxu0 0
  %339 = vmatmul.mubr.bf16.gmra.mxu0 %v304
  %v340 = vpop.f32.mrf.mxu0
  %v341 = vadd.f32 %v289, %v340
  %v342 = vpop.f32.mrf.mxu0
  %v343 = vpop.f32.mrf.mxu0
  %v344 = vpop.f32.mrf.mxu0
  %345 = vdwg.mxu0
  %v346 = vadd.f32 %v278, %v341
  %v347 = vxor.u32 %v346, 2147483648
  %v348 = vmul.f32 %v347, 1.442695
  %v349 = vpow.pop %v348
  %v350 = vadd.f32 %v349, 1.0
  %v351 = vrcp.pop %v350
  %v352 = vmul.f32 1.0, %v351
  %354 = vrot.lane.b32.xlu0 %v341, 64
  %v355 = vpop.permute.xlu0 %354
  %v357 = vmul.f32 %v352, %v355
  %359 = vrot.lane.b32.xlu0 %v357, 64
  %v360 = vpop.permute.xlu0 %359
  %v362 = vadd.f32 %v278, %v360
  %v363 = vtanh.pop %v362
  %v364 = vsub.f32 1.0, %v352
  %366 = vrot.lane.b32.xlu0 %v363, 96
  %v367 = vpop.permute.xlu0 %366
  %v369 = vmul.f32 %v364, %v367
  %371 = vrot.lane.b32.xlu0 %v159, 32
  %v372 = vpop.permute.xlu0 %371
  %v374 = vmul.f32 %v352, %v372
  %v375 = vadd.f32 %v369, %v374
  %377 = vrot.lane.b32.xlu0 %v375, 96
  %v378 = vpop.permute.xlu0 %377
  %vm380 = vcmask 254976
  %381 = vst.msk [vmem:[%s11] sm:$0x3] %vm380, %v378
  // Predicated region
  $region46: #{pointnav_baseline_forward.7} parent=0 // pred_check
    _
  $region47: #{pointnav_baseline_forward.7} parent=0 // pred_check_branch
    %383 = sbr.rel (0) target = $region49
  $region48: #{pointnav_baseline_forward.7} parent=0 // pred_region
    _
  $region49: #{pointnav_baseline_forward.7} parent=0 // pred_fallthru
    _
  // Predicated region
  $region50: #{pointnav_baseline_forward.7} parent=0 // pred_check
    _
  $region51: #{pointnav_baseline_forward.7} parent=0 // pred_check_branch
    %385 = sbr.rel (0) target = $region53
  $region52: #{pointnav_baseline_forward.7} parent=0 // pred_region
    _
  $region53: #{pointnav_baseline_forward.7} parent=0 // pred_fallthru
    _

// kernel: pointnav_baseline_forward.6
$region0: #{pointnav_baseline_forward.6}
  #allocation0 [shape = 'u32[]', space=smem, size = 0x4, offset = 0x4, fixed_abs, tag = 'smem constant byte address 0x4 - core index']
  #allocation1 [shape = 'u32[144,128]{1,0:T(1,128)}', space=vmem, size = 0x12000, scoped, tag = 'internal scratch']
  %s0 = inlined_call_operand.vmem [shape: bf16[8,576], index: 0, kind: input, shape index: {}]
  %s1 = inlined_call_operand.vmem [shape: bf16[576,32], index: 1, kind: input, shape index: {}]
  %s2 = inlined_call_operand.vmem [shape: f32[1,32], index: 2, kind: input, shape index: {}]
  %s3 = inlined_call_operand.vmem [shape: bf16[8,32], index: 3, kind: output, shape index: {}]
  %s4 = sld [smem:[#allocation0]]
  $region22: #{pointnav_baseline_forward.6} parent=0
    _
  %s6 = ssub.s32 1, %s4
  %s7 = scalar_select 0, %s6, %s4
  // Predicated region
  $region2: #{pointnav_baseline_forward.6} parent=0 // pred_check
    _
  $region3: #{pointnav_baseline_forward.6} parent=0 // pred_check_branch
    %9 = sbr.rel (0) target = $region5
  $region4: #{pointnav_baseline_forward.6} parent=0 // pred_region
    _
  $region5: #{pointnav_baseline_forward.6} parent=0 // pred_fallthru
    _
  // Predicated region
  $region6: #{pointnav_baseline_forward.6} parent=0 // pred_check
    _
  $region7: #{pointnav_baseline_forward.6} parent=0 // pred_check_branch
    %11 = sbr.rel (0) target = $region9
  $region8: #{pointnav_baseline_forward.6} parent=0 // pred_region
    _
  $region9: #{pointnav_baseline_forward.6} parent=0 // pred_fallthru
    _
  // Predicated region
  $region10: #{pointnav_baseline_forward.6} parent=0 // pred_check
    _
  $region11: #{pointnav_baseline_forward.6} parent=0 // pred_check_branch
    %13 = sbr.rel (0) target = $region13
  $region12: #{pointnav_baseline_forward.6} parent=0 // pred_region
    _
  $region13: #{pointnav_baseline_forward.6} parent=0 // pred_fallthru
    _
  %v15 = vld [vmem:[%s0] sm:$0xff]
  %v16 = vld [vmem:[%s0 + $0x8] sm:$0xff]
  %v17 = vld [vmem:[%s0 + $0x10] sm:$0xf]
  %v18 = vld [vmem:[%s1] sm:$0xf]
  %v19 = vld [vmem:[%s1 + $0x4] sm:$0xf]
  %v20 = vld [vmem:[%s1 + $0x8] sm:$0xf]
  %v21 = vld [vmem:[%s1 + $0xc] sm:$0xf]
  %v22 = vld [vmem:[%s1 + $0x10] sm:$0xf]
  %v23 = vld [vmem:[%s1 + $0x14] sm:$0xf]
  %v24 = vld [vmem:[%s1 + $0x18] sm:$0xf]
  %v25 = vld [vmem:[%s1 + $0x1c] sm:$0xf]
  %v26 = vld [vmem:[%s1 + $0x20] sm:$0xf]
  %v27 = vld [vmem:[%s1 + $0x24] sm:$0xf]
  %v28 = vld [vmem:[%s1 + $0x28] sm:$0xf]
  %v29 = vld [vmem:[%s1 + $0x2c] sm:$0xf]
  %v30 = vld [vmem:[%s1 + $0x30] sm:$0xf]
  %v31 = vld [vmem:[%s1 + $0x34] sm:$0xf]
  %v32 = vld [vmem:[%s1 + $0x38] sm:$0xf]
  %v33 = vld [vmem:[%s1 + $0x3c] sm:$0xf]
  %v34 = vld [vmem:[%s1 + $0x40] sm:$0xf]
  %v35 = vld [vmem:[%s1 + $0x44] sm:$0xf]
  %v36 = vld [vmem:[%s1 + $0x48] sm:$0xf]
  %v37 = vld [vmem:[%s1 + $0x4c] sm:$0xf]
  %v38 = vld [vmem:[%s1 + $0x50] sm:$0xf]
  %v39 = vld [vmem:[%s1 + $0x54] sm:$0xf]
  %v40 = vld [vmem:[%s1 + $0x58] sm:$0xf]
  %v41 = vld [vmem:[%s1 + $0x5c] sm:$0xf]
  %v42 = vld [vmem:[%s1 + $0x60] sm:$0xf]
  %v43 = vld [vmem:[%s1 + $0x64] sm:$0xf]
  %v44 = vld [vmem:[%s1 + $0x68] sm:$0xf]
  %v45 = vld [vmem:[%s1 + $0x6c] sm:$0xf]
  %v46 = vld [vmem:[%s1 + $0x70] sm:$0xf]
  %v47 = vld [vmem:[%s1 + $0x74] sm:$0xf]
  %v48 = vld [vmem:[%s1 + $0x78] sm:$0xf]
  %v49 = vld [vmem:[%s1 + $0x7c] sm:$0xf]
  %v50 = vld [vmem:[%s1 + $0x80] sm:$0xf]
  %v51 = vld [vmem:[%s1 + $0x84] sm:$0xf]
  %v52 = vld [vmem:[%s1 + $0x88] sm:$0xf]
  %v53 = vld [vmem:[%s1 + $0x8c] sm:$0xf]
  %v54 = vld [vmem:[%s1 + $0x90] sm:$0xf]
  %v55 = vld [vmem:[%s1 + $0x94] sm:$0xf]
  %v56 = vld [vmem:[%s1 + $0x98] sm:$0xf]
  %v57 = vld [vmem:[%s1 + $0x9c] sm:$0xf]
  %v58 = vld [vmem:[%s1 + $0xa0] sm:$0xf]
  %v59 = vld [vmem:[%s1 + $0xa4] sm:$0xf]
  %v60 = vld [vmem:[%s1 + $0xa8] sm:$0xf]
  %v61 = vld [vmem:[%s1 + $0xac] sm:$0xf]
  %v62 = vld [vmem:[%s1 + $0xb0] sm:$0xf]
  %v63 = vld [vmem:[%s1 + $0xb4] sm:$0xf]
  %v64 = vld [vmem:[%s1 + $0xb8] sm:$0xf]
  %v65 = vld [vmem:[%s1 + $0xbc] sm:$0xf]
  %v66 = vld [vmem:[%s1 + $0xc0] sm:$0xf]
  %v67 = vld [vmem:[%s1 + $0xc4] sm:$0xf]
  %v68 = vld [vmem:[%s1 + $0xc8] sm:$0xf]
  %v69 = vld [vmem:[%s1 + $0xcc] sm:$0xf]
  %v70 = vld [vmem:[%s1 + $0xd0] sm:$0xf]
  %v71 = vld [vmem:[%s1 + $0xd4] sm:$0xf]
  %v72 = vld [vmem:[%s1 + $0xd8] sm:$0xf]
  %v73 = vld [vmem:[%s1 + $0xdc] sm:$0xf]
  %v74 = vld [vmem:[%s1 + $0xe0] sm:$0xf]
  %v75 = vld [vmem:[%s1 + $0xe4] sm:$0xf]
  %v76 = vld [vmem:[%s1 + $0xe8] sm:$0xf]
  %v77 = vld [vmem:[%s1 + $0xec] sm:$0xf]
  %v78 = vld [vmem:[%s1 + $0xf0] sm:$0xf]
  %v79 = vld [vmem:[%s1 + $0xf4] sm:$0xf]
  %v80 = vld [vmem:[%s1 + $0xf8] sm:$0xf]
  %v81 = vld [vmem:[%s1 + $0xfc] sm:$0xf]
  %v82 = vld [vmem:[%s1 + $0x100] sm:$0xf]
  %v83 = vld [vmem:[%s1 + $0x104] sm:$0xf]
  %v84 = vld [vmem:[%s1 + $0x108] sm:$0xf]
  %v85 = vld [vmem:[%s1 + $0x10c] sm:$0xf]
  %v86 = vld [vmem:[%s1 + $0x110] sm:$0xf]
  %v87 = vld [vmem:[%s1 + $0x114] sm:$0xf]
  %v88 = vld [vmem:[%s1 + $0x118] sm:$0xf]
  %v89 = vld [vmem:[%s1 + $0x11c] sm:$0xf]
  %v90 = vld [vmem:[%s2] sm:$0x1]
  %v92 = vlaneseq
  %v93 = vshrl.u32 %v92, 7
  %v94 = vsub.s32 0, %v93
  %v95 = vrot.slane %v90, %v94
  %v100 = vunpack.c.l.b16 %v15
  %v101 = vunpack.c.h.b16 %v15
  %v102 = vunpack.c.l.b16 %v16
  %v103 = vunpack.c.h.b16 %v16
  %v104 = vunpack.c.l.b16 %v17
  %v105 = vpack.c.b16 %v100, %v100
  %v106 = vpack.c.b16 %v101, %v101
  %v107 = vpack.c.b16 %v102, %v102
  %v108 = vpack.c.b16 %v103, %v103
  %v109 = vpack.c.b16 %v104, %v104
  %v186 = vunpack.c.l.b16 %v18
  %v187 = vunpack.c.l.b16 %v19
  %v188 = vunpack.c.l.b16 %v20
  %v189 = vunpack.c.l.b16 %v21
  %v190 = vunpack.c.l.b16 %v22
  %v191 = vunpack.c.l.b16 %v23
  %v192 = vunpack.c.l.b16 %v24
  %v193 = vunpack.c.l.b16 %v25
  %v194 = vunpack.c.l.b16 %v26
  %v195 = vunpack.c.l.b16 %v27
  %v196 = vunpack.c.l.b16 %v28
  %v197 = vunpack.c.l.b16 %v29
  %v198 = vunpack.c.l.b16 %v30
  %v199 = vunpack.c.l.b16 %v31
  %v200 = vunpack.c.l.b16 %v32
  %v201 = vunpack.c.l.b16 %v33
  %v202 = vunpack.c.l.b16 %v34
  %v203 = vunpack.c.l.b16 %v35
  %v204 = vunpack.c.l.b16 %v36
  %v205 = vunpack.c.l.b16 %v37
  %v206 = vunpack.c.l.b16 %v38
  %v207 = vunpack.c.l.b16 %v39
  %v208 = vunpack.c.l.b16 %v40
  %v209 = vunpack.c.l.b16 %v41
  %v210 = vunpack.c.l.b16 %v42
  %v211 = vunpack.c.l.b16 %v43
  %v212 = vunpack.c.l.b16 %v44
  %v213 = vunpack.c.l.b16 %v45
  %v214 = vunpack.c.l.b16 %v46
  %v215 = vunpack.c.l.b16 %v47
  %v216 = vunpack.c.l.b16 %v48
  %v217 = vunpack.c.l.b16 %v49
  %v218 = vunpack.c.l.b16 %v50
  %v219 = vunpack.c.l.b16 %v51
  %v220 = vunpack.c.l.b16 %v52
  %v221 = vunpack.c.l.b16 %v53
  %v222 = vunpack.c.l.b16 %v54
  %v223 = vunpack.c.l.b16 %v55
  %v224 = vunpack.c.l.b16 %v56
  %v225 = vunpack.c.l.b16 %v57
  %v226 = vunpack.c.l.b16 %v58
  %v227 = vunpack.c.l.b16 %v59
  %v228 = vunpack.c.l.b16 %v60
  %v229 = vunpack.c.l.b16 %v61
  %v230 = vunpack.c.l.b16 %v62
  %v231 = vunpack.c.l.b16 %v63
  %v232 = vunpack.c.l.b16 %v64
  %v233 = vunpack.c.l.b16 %v65
  %v234 = vunpack.c.l.b16 %v66
  %v235 = vunpack.c.l.b16 %v67
  %v236 = vunpack.c.l.b16 %v68
  %v237 = vunpack.c.l.b16 %v69
  %v238 = vunpack.c.l.b16 %v70
  %v239 = vunpack.c.l.b16 %v71
  %v240 = vunpack.c.l.b16 %v72
  %v241 = vunpack.c.l.b16 %v73
  %v242 = vunpack.c.l.b16 %v74
  %v243 = vunpack.c.l.b16 %v75
  %v244 = vunpack.c.l.b16 %v76
  %v245 = vunpack.c.l.b16 %v77
  %v246 = vunpack.c.l.b16 %v78
  %v247 = vunpack.c.l.b16 %v79
  %v248 = vunpack.c.l.b16 %v80
  %v249 = vunpack.c.l.b16 %v81
  %v250 = vunpack.c.l.b16 %v82
  %v251 = vunpack.c.l.b16 %v83
  %v252 = vunpack.c.l.b16 %v84
  %v253 = vunpack.c.l.b16 %v85
  %v254 = vunpack.c.l.b16 %v86
  %v255 = vunpack.c.l.b16 %v87
  %v256 = vunpack.c.l.b16 %v88
  %v257 = vunpack.c.l.b16 %v89
  %v258 = vpack.c.b16 %v187, %v186
  %v259 = vpack.c.b16 %v189, %v188
  %v260 = vpack.c.b16 %v191, %v190
  %v261 = vpack.c.b16 %v193, %v192
  %v262 = vpack.c.b16 %v195, %v194
  %v263 = vpack.c.b16 %v197, %v196
  %v264 = vpack.c.b16 %v199, %v198
  %v265 = vpack.c.b16 %v201, %v200
  %v266 = vpack.c.b16 %v203, %v202
  %v267 = vpack.c.b16 %v205, %v204
  %v268 = vpack.c.b16 %v207, %v206
  %v269 = vpack.c.b16 %v209, %v208
  %v270 = vpack.c.b16 %v211, %v210
  %v271 = vpack.c.b16 %v213, %v212
  %v272 = vpack.c.b16 %v215, %v214
  %v273 = vpack.c.b16 %v217, %v216
  %v274 = vpack.c.b16 %v219, %v218
  %v275 = vpack.c.b16 %v221, %v220
  %v276 = vpack.c.b16 %v223, %v222
  %v277 = vpack.c.b16 %v225, %v224
  %v278 = vpack.c.b16 %v227, %v226
  %v279 = vpack.c.b16 %v229, %v228
  %v280 = vpack.c.b16 %v231, %v230
  %v281 = vpack.c.b16 %v233, %v232
  %v282 = vpack.c.b16 %v235, %v234
  %v283 = vpack.c.b16 %v237, %v236
  %v284 = vpack.c.b16 %v239, %v238
  %v285 = vpack.c.b16 %v241, %v240
  %v286 = vpack.c.b16 %v243, %v242
  %v287 = vpack.c.b16 %v245, %v244
  %v288 = vpack.c.b16 %v247, %v246
  %v289 = vpack.c.b16 %v249, %v248
  %v290 = vpack.c.b16 %v251, %v250
  %v291 = vpack.c.b16 %v253, %v252
  %v292 = vpack.c.b16 %v255, %v254
  %v293 = vpack.c.b16 %v257, %v256
  %vm330 = vcmask 523264
  %v332 = vsel %vm330, %v109, 0
  %334 = vmatprep.subr.bf16.mxu0 0
  %335 = vmatpush1.bf16.msra.mxu0 %v265
  %336 = vmatprep.subr.bf16.mxu0 0
  %337 = vmatpush1.bf16.msra.mxu0 %v264
  %338 = vmatprep.subr.bf16.mxu0 0
  %339 = vmatpush1.bf16.msra.mxu0 %v263
  %340 = vmatprep.subr.bf16.mxu0 0
  %341 = vmatpush1.bf16.msra.mxu0 %v262
  %342 = vmatprep.subr.bf16.mxu0 0
  %343 = vmatpush1.bf16.msra.mxu0 %v261
  %344 = vmatprep.subr.bf16.mxu0 0
  %345 = vmatpush1.bf16.msra.mxu0 %v260
  %346 = vmatprep.subr.bf16.mxu0 0
  %347 = vmatpush1.bf16.msra.mxu0 %v259
  %348 = vmatprep.subr.bf16.mxu0 0
  %349 = vmatpush1.bf16.msra.mxu0 %v258
  %350 = vmatprep.subr.bf16.mxu0 0
  %351 = vmatpush2.bf16.msra.mxu0 %v273
  %352 = vmatprep.subr.bf16.mxu0 0
  %353 = vmatpush2.bf16.msra.mxu0 %v272
  %354 = vmatprep.subr.bf16.mxu0 0
  %355 = vmatpush2.bf16.msra.mxu0 %v271
  %356 = vmatprep.subr.bf16.mxu0 0
  %357 = vmatpush2.bf16.msra.mxu0 %v270
  %358 = vmatprep.subr.bf16.mxu0 0
  %359 = vmatpush2.bf16.msra.mxu0 %v269
  %360 = vmatprep.subr.bf16.mxu0 0
  %361 = vmatpush2.bf16.msra.mxu0 %v268
  %362 = vmatprep.subr.bf16.mxu0 0
  %363 = vmatpush2.bf16.msra.mxu0 %v267
  %364 = vmatprep.subr.bf16.mxu0 0
  %365 = vmatpush2.bf16.msra.mxu0 %v266
  %366 = vmatprep.mubr.bf16.mxu0 %v106
  %367 = vmatmul.mubr.bf16.gmra.mxu0 %v105
  %v368 = vpop.f32.mrf.mxu0
  %v369 = vadd.f32 %v95, %v368
  %v370 = vpop.f32.mrf.mxu0
  %v371 = vpop.f32.mrf.mxu0
  %v372 = vpop.f32.mrf.mxu0
  %373 = vdwg.mxu0
  %374 = vmatprep.subr.bf16.mxu0 0
  %375 = vmatpush1.bf16.msra.mxu0 %v281
  %376 = vmatprep.subr.bf16.mxu0 0
  %377 = vmatpush1.bf16.msra.mxu0 %v280
  %378 = vmatprep.subr.bf16.mxu0 0
  %379 = vmatpush1.bf16.msra.mxu0 %v279
  %380 = vmatprep.subr.bf16.mxu0 0
  %381 = vmatpush1.bf16.msra.mxu0 %v278
  %382 = vmatprep.subr.bf16.mxu0 0
  %383 = vmatpush1.bf16.msra.mxu0 %v277
  %384 = vmatprep.subr.bf16.mxu0 0
  %385 = vmatpush1.bf16.msra.mxu0 %v276
  %386 = vmatprep.subr.bf16.mxu0 0
  %387 = vmatpush1.bf16.msra.mxu0 %v275
  %388 = vmatprep.subr.bf16.mxu0 0
  %389 = vmatpush1.bf16.msra.mxu0 %v274
  %390 = vmatprep.subr.bf16.mxu0 0
  %391 = vmatpush2.bf16.msra.mxu0 %v289
  %392 = vmatprep.subr.bf16.mxu0 0
  %393 = vmatpush2.bf16.msra.mxu0 %v288
  %394 = vmatprep.subr.bf16.mxu0 0
  %395 = vmatpush2.bf16.msra.mxu0 %v287
  %396 = vmatprep.subr.bf16.mxu0 0
  %397 = vmatpush2.bf16.msra.mxu0 %v286
  %398 = vmatprep.subr.bf16.mxu0 0
  %399 = vmatpush2.bf16.msra.mxu0 %v285
  %400 = vmatprep.subr.bf16.mxu0 0
  %401 = vmatpush2.bf16.msra.mxu0 %v284
  %402 = vmatprep.subr.bf16.mxu0 0
  %403 = vmatpush2.bf16.msra.mxu0 %v283
  %404 = vmatprep.subr.bf16.mxu0 0
  %405 = vmatpush2.bf16.msra.mxu0 %v282
  %406 = vmatprep.mubr.bf16.mxu0 %v108
  %407 = vmatmul.mubr.bf16.gmra.mxu0 %v107
  %v408 = vpop.f32.mrf.mxu0
  %v409 = vadd.f32 %v369, %v408
  %v410 = vpop.f32.mrf.mxu0
  %v411 = vpop.f32.mrf.mxu0
  %v412 = vpop.f32.mrf.mxu0
  %413 = vdwg.mxu0
  %414 = vmatprep.subr.bf16.mxu0 0
  %415 = vmatpush1.bf16.msra.mxu0 0
  %416 = vmatprep.subr.bf16.mxu0 0
  %417 = vmatpush1.bf16.msra.mxu0 0
  %418 = vmatprep.subr.bf16.mxu0 0
  %419 = vmatpush1.bf16.msra.mxu0 0
  %420 = vmatprep.subr.bf16.mxu0 0
  %421 = vmatpush1.bf16.msra.mxu0 0
  %422 = vmatprep.subr.bf16.mxu0 0
  %423 = vmatpush1.bf16.msra.mxu0 %v293
  %424 = vmatprep.subr.bf16.mxu0 0
  %425 = vmatpush1.bf16.msra.mxu0 %v292
  %426 = vmatprep.subr.bf16.mxu0 0
  %427 = vmatpush1.bf16.msra.mxu0 %v291
  %428 = vmatprep.subr.bf16.mxu0 0
  %429 = vmatpush1.bf16.msra.mxu0 %v290
  %430 = vmatprep.subr.bf16.mxu0 0
  %431 = vmatpush2.bf16.msra.mxu0 0
  %432 = vmatprep.subr.bf16.mxu0 0
  %433 = vmatpush2.bf16.msra.mxu0 0
  %434 = vmatprep.subr.bf16.mxu0 0
  %435 = vmatpush2.bf16.msra.mxu0 0
  %436 = vmatprep.subr.bf16.mxu0 0
  %437 = vmatpush2.bf16.msra.mxu0 0
  %438 = vmatprep.subr.bf16.mxu0 0
  %439 = vmatpush2.bf16.msra.mxu0 0
  %440 = vmatprep.subr.bf16.mxu0 0
  %441 = vmatpush2.bf16.msra.mxu0 0
  %442 = vmatprep.subr.bf16.mxu0 0
  %443 = vmatpush2.bf16.msra.mxu0 0
  %444 = vmatprep.subr.bf16.mxu0 0
  %445 = vmatpush2.bf16.msra.mxu0 0
  %446 = vmatprep.mubr.bf16.mxu0 0
  %447 = vmatmul.mubr.bf16.gmra.mxu0 %v332
  %v448 = vpop.f32.mrf.mxu0
  %v449 = vadd.f32 %v409, %v448
  %v450 = vpop.f32.mrf.mxu0
  %v451 = vpop.f32.mrf.mxu0
  %v452 = vpop.f32.mrf.mxu0
  %453 = vdwg.mxu0
  %v454 = vmax.f32 %v449, 0.0
  %v455 = vpack.c.bf16 %v454, %v454
  %vm456 = vcmask 257024
  %457 = vst.msk [vmem:[%s3] sm:$0xf] %vm456, %v455
  // Predicated region
  $region14: #{pointnav_baseline_forward.6} parent=0 // pred_check
    _
  $region15: #{pointnav_baseline_forward.6} parent=0 // pred_check_branch
    %459 = sbr.rel (0) target = $region17
  $region16: #{pointnav_baseline_forward.6} parent=0 // pred_region
    _
  $region17: #{pointnav_baseline_forward.6} parent=0 // pred_fallthru
    _
  // Predicated region
  $region18: #{pointnav_baseline_forward.6} parent=0 // pred_check
    _
  $region19: #{pointnav_baseline_forward.6} parent=0 // pred_check_branch
    %461 = sbr.rel (0) target = $region21
  $region20: #{pointnav_baseline_forward.6} parent=0 // pred_region
    _
  $region21: #{pointnav_baseline_forward.6} parent=0 // pred_fallthru
    _

</llo_original>
